<compile_context>
chip_gen: v5e
topology: v5e:2x2
jax: 0.10.0
libtpu: 0.0.40
codegen_flags: <defaults>
</compile_context>

<pallas_src>
import math

import jax
import jax.numpy as jnp
from jax.experimental import pallas as pl
from jax.experimental.pallas import tpu as pltpu

# ----------------------------- model hyper-params -----------------------------
VOCAB = 100
VOCAB_PAD = 128          # vocab padded to a full lane tile for the one-hot matmul
D_MODEL = 32
NUM_HEADS = 4
D_K = D_MODEL // NUM_HEADS
D_FF = 64
NUM_LAYERS = 2
MAX_SEQ = 64
EPS = 1e-5               # nn.LayerNorm default
OUT_LANES = 128          # lane-dense output slab width


# ------------------------------- Pallas kernel --------------------------------
def transformer_kernel(tok_ref, emb_ref, pe_ref, hmask_ref, smask_ref,
                       mats_ref, vecs_ref, out_ref):
    """Full TransformerEncoder forward (embedding + PE + all layers) for the
    whole batch, flattened to (B*S, D), in a single grid step."""
    BS = tok_ref.shape[0]                                            # B * S

    # ---- embedding gather via one-hot matmul (tokens < VOCAB <= VOCAB_PAD) ----
    tok = tok_ref[...]                                               # (BS, 1) int32
    vocab_iota = jax.lax.broadcasted_iota(jnp.int32, (BS, VOCAB_PAD), 1)
    onehot = (vocab_iota == tok).astype(jnp.float32)                 # (BS, VOCAB_PAD)
    x = jnp.dot(onehot, emb_ref[...], preferred_element_type=jnp.float32)
    x = x + pe_ref[...]                                              # (BS, D)

    head_mask = hmask_ref[...]       # (H*BS, D)  block-diag per-head column mask
    score_mask = smask_ref[...]      # (H*BS, BS) 0 within-sequence, -1e30 cross-batch
    inv_sqrt_dk = 1.0 / math.sqrt(D_K)

    for l in range(NUM_LAYERS):                     # static: both layers fused
        # --- unpack this layer's weights: full-lane (unmasked) VMEM loads,
        #     padding lanes are zero so full-width matmuls stay exact ---
        w_qkv = mats_ref[l, 0, 0:D_MODEL, :]                         # (32, 128) [:,96:]=0
        w_o   = mats_ref[l, 1, 0:D_MODEL, :]                         # (32, 128) [:,32:]=0
        w_1   = mats_ref[l, 2, 0:D_MODEL, :]                         # (32, 128) [:,64:]=0
        w_2   = mats_ref[l, 3, :, :]                                 # (64, 128) [:,32:]=0
        vec   = vecs_ref[l]                                          # (8, 128)
        b_qkv = vec[0:1, :]                                          # lanes 96: = 0
        b_o   = vec[1:2, 0:D_MODEL]
        b_1   = vec[2:3, :]                                          # lanes 64: = 0
        b_2   = vec[3:4, 0:D_MODEL]
        g_1   = vec[4:5, 0:D_MODEL]
        be_1  = vec[5:6, 0:D_MODEL]
        g_2   = vec[6:7, 0:D_MODEL]
        be_2  = vec[7:8, 0:D_MODEL]

        # --- multi-head self-attention, all heads and all sequences at once ---
        qkv = jnp.dot(x, w_qkv, preferred_element_type=jnp.float32) + b_qkv
        q = qkv[:, 0:D_MODEL]
        k = qkv[:, D_MODEL:2 * D_MODEL]
        v = qkv[:, 2 * D_MODEL:3 * D_MODEL]

        # scores for all (head, batch, query) rows in one matmul
        q_bd = jnp.tile(q, (NUM_HEADS, 1)) * head_mask               # (H*BS, D)
        scores = jax.lax.dot_general(q_bd, k, (((1,), (1,)), ((), ())),
                                     preferred_element_type=jnp.float32)
        scores = scores * inv_sqrt_dk + score_mask                   # (H*BS, BS)
        scores = scores - jnp.max(scores, axis=-1, keepdims=True)
        p = jnp.exp(scores)
        p = p / jnp.sum(p, axis=-1, keepdims=True)                   # exact softmax

        # P.V for all heads in one matmul; head h keeps only its own column block
        pv = jnp.dot(p, v, preferred_element_type=jnp.float32) * head_mask
        attn = pv[0:BS]
        for h in range(1, NUM_HEADS):                # fold head blocks -> (BS, D)
            attn = attn + pv[h * BS:(h + 1) * BS]

        attn_o = jnp.dot(attn, w_o,
                         preferred_element_type=jnp.float32)[:, 0:D_MODEL] + b_o

        # --- residual + LayerNorm 1 ---
        resid = x + attn_o
        mu = jnp.mean(resid, axis=-1, keepdims=True)
        var = jnp.mean((resid - mu) ** 2, axis=-1, keepdims=True)
        h1 = (resid - mu) * jax.lax.rsqrt(var + EPS) * g_1 + be_1

        # --- position-wise feed-forward ---
        ff = jnp.dot(h1, w_1, preferred_element_type=jnp.float32) + b_1
        ff = jnp.maximum(ff, 0.0)
        ff = jnp.dot(ff[:, 0:D_FF], w_2,
                     preferred_element_type=jnp.float32)[:, 0:D_MODEL] + b_2

        # --- residual + LayerNorm 2 ---
        resid2 = h1 + ff
        mu2 = jnp.mean(resid2, axis=-1, keepdims=True)
        var2 = jnp.mean((resid2 - mu2) ** 2, axis=-1, keepdims=True)
        x = (resid2 - mu2) * jax.lax.rsqrt(var2 + EPS) * g_2 + be_2

    # lane-dense store: pad to 128 lanes so the store is an unmasked full vst
    pad = jnp.zeros((BS, OUT_LANES - D_MODEL), jnp.float32)
    out_ref[...] = jnp.concatenate([x, pad], axis=-1)


def transformer_encoder_forward(tokens, emb_pad, pe_rep, head_mask, score_mask,
                                mats, vecs):
    """Single fused pallas_call for the whole encoder forward (whole batch in
    one grid step)."""
    B, S = tokens.shape
    BS = B * S
    tok2d = tokens.reshape(BS, 1).astype(jnp.int32)
    out = pl.pallas_call(
        transformer_kernel,
        out_shape=jax.ShapeDtypeStruct((BS, OUT_LANES), jnp.float32),
        grid=(1,),
        in_specs=[
            pl.BlockSpec((BS, 1), lambda i: (0, 0)),                 # tokens
            pl.BlockSpec(emb_pad.shape, lambda i: (0, 0)),           # embedding table
            pl.BlockSpec(pe_rep.shape, lambda i: (0, 0)),            # positional enc
            pl.BlockSpec(head_mask.shape, lambda i: (0, 0)),         # head block mask
            pl.BlockSpec(score_mask.shape, lambda i: (0, 0)),        # cross-batch mask
            pl.BlockSpec(mats.shape, lambda i: (0, 0, 0, 0)),        # packed matrices
            pl.BlockSpec(vecs.shape, lambda i: (0, 0, 0)),           # packed vectors
        ],
        out_specs=pl.BlockSpec((BS, OUT_LANES), lambda i: (0, 0)),
        compiler_params=pltpu.CompilerParams(
            dimension_semantics=("arbitrary",)),
    )(tok2d, emb_pad, pe_rep, head_mask, score_mask, mats, vecs)
    return out[:, :D_MODEL].reshape(B, S, D_MODEL)


# --------------------------- parameter construction ---------------------------
def make_positional_encoding(max_seq, d_model):
    pos = jnp.arange(max_seq, dtype=jnp.float32)[:, None]
    div = jnp.power(10000.0, jnp.arange(d_model, dtype=jnp.float32) / d_model)[None, :]
    angle = pos / div                             # raw pe before masking
    sin_rows = jnp.sin(angle)
    pe = angle
    pe = pe.at[0::2].set(sin_rows[0::2])          # pe[~odd] = sin(pe[~odd])
    n_odd = max_seq // 2
    # pe[odd] = cos(pe[~odd]) -> row 2k+1 = cos(sin(row 2k))
    pe = pe.at[1::2].set(jnp.cos(sin_rows[0::2][:n_odd]))
    return pe


def make_masks(B, S):
    """Host-side precompute of the per-head column mask and additive
    cross-batch score mask used inside the kernel."""
    BS = B * S
    HBS = NUM_HEADS * BS
    r = jnp.arange(HBS)
    head_of_row = r // BS                                            # (HBS,)
    d = jnp.arange(D_MODEL)
    head_mask = (head_of_row[:, None] == (d[None, :] // D_K)).astype(jnp.float32)
    batch_of_row = (r % BS) // S                                     # (HBS,)
    batch_of_col = jnp.arange(BS) // S                               # (BS,)
    score_mask = jnp.where(batch_of_row[:, None] == batch_of_col[None, :],
                           0.0, -1e30).astype(jnp.float32)
    return head_mask, score_mask


def init_layer_params(key):
    ks = jax.random.split(key, 12)

    def lin(kw, kb, fan_in, fan_out):
        w = jax.random.normal(kw, (fan_in, fan_out), jnp.float32) / math.sqrt(fan_in)
        b = 0.02 * jax.random.normal(kb, (1, fan_out), jnp.float32)
        return w, b

    wq, bq = lin(ks[0], ks[1], D_MODEL, D_MODEL)
    wk, bk = lin(ks[2], ks[3], D_MODEL, D_MODEL)
    wv, bv = lin(ks[4], ks[5], D_MODEL, D_MODEL)
    wo, bo = lin(ks[6], ks[7], D_MODEL, D_MODEL)
    w1, b1 = lin(ks[8], ks[9], D_MODEL, D_FF)
    w2, b2 = lin(ks[10], ks[11], D_FF, D_MODEL)
    g1 = jnp.ones((1, D_MODEL), jnp.float32)
    be1 = jnp.zeros((1, D_MODEL), jnp.float32)
    g2 = jnp.ones((1, D_MODEL), jnp.float32)
    be2 = jnp.zeros((1, D_MODEL), jnp.float32)
    return (wq, bq, wk, bk, wv, bv, wo, bo, g1, be1, w1, b1, w2, b2, g2, be2)


def pack_params(layer_params):
    """Pack all per-layer weights into two DMA-friendly, 128-lane arrays."""
    mats = jnp.zeros((NUM_LAYERS, 4, 64, 128), jnp.float32)
    vecs = jnp.zeros((NUM_LAYERS, 8, 128), jnp.float32)
    for l, (wq, bq, wk, bk, wv, bv, wo, bo,
            g1, be1, w1, b1, w2, b2, g2, be2) in enumerate(layer_params):
        w_qkv = jnp.concatenate([wq, wk, wv], axis=1)                 # (32, 96)
        b_qkv = jnp.concatenate([bq, bk, bv], axis=1)                 # (1, 96)
        mats = mats.at[l, 0, :D_MODEL, :3 * D_MODEL].set(w_qkv)
        mats = mats.at[l, 1, :D_MODEL, :D_MODEL].set(wo)
        mats = mats.at[l, 2, :D_MODEL, :D_FF].set(w1)
        mats = mats.at[l, 3, :D_FF, :D_MODEL].set(w2)
        vecs = vecs.at[l, 0, :3 * D_MODEL].set(b_qkv[0])
        vecs = vecs.at[l, 1, :D_MODEL].set(bo[0])
        vecs = vecs.at[l, 2, :D_FF].set(b1[0])
        vecs = vecs.at[l, 3, :D_MODEL].set(b2[0])
        vecs = vecs.at[l, 4, :D_MODEL].set(g1[0])
        vecs = vecs.at[l, 5, :D_MODEL].set(be1[0])
        vecs = vecs.at[l, 6, :D_MODEL].set(g2[0])
        vecs = vecs.at[l, 7, :D_MODEL].set(be2[0])
    return mats, vecs


# --------------------------- pure-JAX reference --------------------------------
def reference_forward(tokens, emb, pe, layer_params):
    with jax.default_matmul_precision("highest"):
        x = emb[tokens] + pe[: tokens.shape[1]][None]
        B, S, D = x.shape

        def ln(t, g, b):
            m = t.mean(-1, keepdims=True)
            v = ((t - m) ** 2).mean(-1, keepdims=True)
            return (t - m) / jnp.sqrt(v + EPS) * g + b

        for (wq, bq, wk, bk, wv, bv, wo, bo,
             g1, be1, w1, b1, w2, b2, g2, be2) in layer_params:
            q = (x @ wq + bq).reshape(B, S, NUM_HEADS, D_K).transpose(0, 2, 1, 3)
            k = (x @ wk + bk).reshape(B, S, NUM_HEADS, D_K).transpose(0, 2, 1, 3)
            v = (x @ wv + bv).reshape(B, S, NUM_HEADS, D_K).transpose(0, 2, 1, 3)
            s = jnp.einsum("bhqd,bhkd->bhqk", q, k) / math.sqrt(D_K)
            p = jax.nn.softmax(s, axis=-1)
            ao = jnp.einsum("bhqk,bhkd->bhqd", p, v).transpose(0, 2, 1, 3).reshape(B, S, D)
            ao = ao @ wo + bo
            h1 = ln(x + ao, g1, be1)
            ff = jnp.maximum(h1 @ w1 + b1, 0.0) @ w2 + b2
            x = ln(h1 + ff, g2, be2)
        return x


# ------------------------------------ main -------------------------------------
if __name__ == "__main__":
    key = jax.random.PRNGKey(0)
    B, S = 2, 8

    tokens = jax.random.randint(jax.random.fold_in(key, 100), (B, S), 0, VOCAB)
    emb = 0.1 * jax.random.normal(jax.random.fold_in(key, 200), (VOCAB, D_MODEL), jnp.float32)
    pe = make_positional_encoding(MAX_SEQ, D_MODEL)
    layer_params = [init_layer_params(jax.random.fold_in(key, 300 + l))
                    for l in range(NUM_LAYERS)]

    # pack everything the kernel needs (done once, outside the hot path)
    emb_pad = jnp.zeros((VOCAB_PAD, D_MODEL), jnp.float32).at[:VOCAB].set(emb)
    pe_rep = jnp.tile(pe[:S], (B, 1))                                # (B*S, D)
    head_mask, score_mask = make_masks(B, S)
    mats, vecs = pack_params(layer_params)

    out = transformer_encoder_forward(tokens, emb_pad, pe_rep, head_mask,
                                      score_mask, mats, vecs)
    out = jax.block_until_ready(out)

    ref = reference_forward(tokens, emb, pe, layer_params)
    assert out.shape == (B, S, D_MODEL)
    max_diff = float(jnp.max(jnp.abs(out - ref)))
    assert jnp.allclose(out, ref, atol=5e-3, rtol=5e-3), (
        "max abs diff = %g" % max_diff)

    print("KERNEL_OK")
</pallas_src>

<mosaic_0001>
module attributes {stable_mosaic.version = 11 : i64} {
  func.func @transformer_kernel(%arg0: i32, %arg1: memref<16x1xi32, #tpu.memory_space<vmem>>, %arg2: memref<128x32xf32, #tpu.memory_space<vmem>>, %arg3: memref<16x32xf32, #tpu.memory_space<vmem>>, %arg4: memref<64x32xf32, #tpu.memory_space<vmem>>, %arg5: memref<64x16xf32, #tpu.memory_space<vmem>>, %arg6: memref<2x4x64x128xf32, #tpu.memory_space<vmem>>, %arg7: memref<2x8x128xf32, #tpu.memory_space<vmem>>, %arg8: memref<16x128xf32, #tpu.memory_space<vmem>>) attributes {dimension_semantics = [#tpu.dimension_semantics<arbitrary>], iteration_bounds = array<i64: 1>, scalar_prefetch = 0 : i64, scratch_operands = 0 : i64, tpu.core_type = #tpu.core_type<tc>, window_params = [{pipeline_mode = #tpu.pipeline_mode<synchronous>, transform_indices = @transform_0, window_bounds = array<i64: 16, 1>}, {pipeline_mode = #tpu.pipeline_mode<synchronous>, transform_indices = @transform_1, window_bounds = array<i64: 128, 32>}, {pipeline_mode = #tpu.pipeline_mode<synchronous>, transform_indices = @transform_2, window_bounds = array<i64: 16, 32>}, {pipeline_mode = #tpu.pipeline_mode<synchronous>, transform_indices = @transform_3, window_bounds = array<i64: 64, 32>}, {pipeline_mode = #tpu.pipeline_mode<synchronous>, transform_indices = @transform_4, window_bounds = array<i64: 64, 16>}, {pipeline_mode = #tpu.pipeline_mode<synchronous>, transform_indices = @transform_5, window_bounds = array<i64: 2, 4, 64, 128>}, {pipeline_mode = #tpu.pipeline_mode<synchronous>, transform_indices = @transform_6, window_bounds = array<i64: 2, 8, 128>}, {pipeline_mode = #tpu.pipeline_mode<synchronous>, transform_indices = @transform_7, window_bounds = array<i64: 16, 128>}]} {
    %c0 = arith.constant 0 : index
    %c0_0 = arith.constant 0 : index
    %0 = vector.load %arg1[%c0, %c0_0] : memref<16x1xi32, #tpu.memory_space<vmem>>, vector<16x1xi32>
    %1 = tpu.iota {dimensions = array<i32: 1>} : vector<16x128xi32>
    %2 = vector.broadcast %0 : vector<16x1xi32> to vector<16x128xi32>
    %3 = arith.cmpi eq, %1, %2 : vector<16x128xi32>
    %4 = arith.extui %3 : vector<16x128xi1> to vector<16x128xi32>
    %5 = arith.sitofp %4 : vector<16x128xi32> to vector<16x128xf32>
    %c0_1 = arith.constant 0 : index
    %c0_2 = arith.constant 0 : index
    %6 = vector.load %arg2[%c0_1, %c0_2] : memref<128x32xf32, #tpu.memory_space<vmem>>, vector<128x32xf32>
    %cst = arith.constant dense<0.000000e+00> : vector<16x32xf32>
    %7 = tpu.matmul %5, %6, %cst {dimension_numbers = #tpu.dot_dimension_numbers<[1], [0], [0], [1], [0, 0, 1, 1], [], []>} : vector<16x128xf32>, vector<128x32xf32>, vector<16x32xf32> -> vector<16x32xf32>
    %c0_3 = arith.constant 0 : index
    %c0_4 = arith.constant 0 : index
    %8 = vector.load %arg3[%c0_3, %c0_4] : memref<16x32xf32, #tpu.memory_space<vmem>>, vector<16x32xf32>
    %9 = arith.addf %7, %8 : vector<16x32xf32>
    %c0_5 = arith.constant 0 : index
    %c0_6 = arith.constant 0 : index
    %10 = vector.load %arg4[%c0_5, %c0_6] : memref<64x32xf32, #tpu.memory_space<vmem>>, vector<64x32xf32>
    %c0_7 = arith.constant 0 : index
    %c0_8 = arith.constant 0 : index
    %11 = vector.load %arg5[%c0_7, %c0_8] : memref<64x16xf32, #tpu.memory_space<vmem>>, vector<64x16xf32>
    %c0_9 = arith.constant 0 : index
    %c0_10 = arith.constant 0 : index
    %c0_11 = arith.constant 0 : index
    %c0_12 = arith.constant 0 : index
    %12 = vector.load %arg6[%c0_9, %c0_10, %c0_11, %c0_12] : memref<2x4x64x128xf32, #tpu.memory_space<vmem>>, vector<1x1x32x128xf32>
    %13 = vector.shape_cast %12 : vector<1x1x32x128xf32> to vector<32x128xf32>
    %c0_13 = arith.constant 0 : index
    %c1 = arith.constant 1 : index
    %c0_14 = arith.constant 0 : index
    %c0_15 = arith.constant 0 : index
    %14 = vector.load %arg6[%c0_13, %c1, %c0_14, %c0_15] : memref<2x4x64x128xf32, #tpu.memory_space<vmem>>, vector<1x1x32x128xf32>
    %15 = vector.shape_cast %14 : vector<1x1x32x128xf32> to vector<32x128xf32>
    %c0_16 = arith.constant 0 : index
    %c2 = arith.constant 2 : index
    %c0_17 = arith.constant 0 : index
    %c0_18 = arith.constant 0 : index
    %16 = vector.load %arg6[%c0_16, %c2, %c0_17, %c0_18] : memref<2x4x64x128xf32, #tpu.memory_space<vmem>>, vector<1x1x32x128xf32>
    %17 = vector.shape_cast %16 : vector<1x1x32x128xf32> to vector<32x128xf32>
    %c0_19 = arith.constant 0 : index
    %c3 = arith.constant 3 : index
    %c0_20 = arith.constant 0 : index
    %c0_21 = arith.constant 0 : index
    %18 = vector.load %arg6[%c0_19, %c3, %c0_20, %c0_21] : memref<2x4x64x128xf32, #tpu.memory_space<vmem>>, vector<1x1x64x128xf32>
    %19 = vector.shape_cast %18 : vector<1x1x64x128xf32> to vector<64x128xf32>
    %c0_22 = arith.constant 0 : index
    %c0_23 = arith.constant 0 : index
    %c0_24 = arith.constant 0 : index
    %20 = vector.load %arg7[%c0_22, %c0_23, %c0_24] : memref<2x8x128xf32, #tpu.memory_space<vmem>>, vector<1x8x128xf32>
    %21 = vector.shape_cast %20 : vector<1x8x128xf32> to vector<8x128xf32>
    %22 = vector.extract_strided_slice %21 {offsets = [0, 0], sizes = [1, 128], strides = [1, 1]} : vector<8x128xf32> to vector<1x128xf32>
    %23 = vector.extract_strided_slice %21 {offsets = [1, 0], sizes = [1, 32], strides = [1, 1]} : vector<8x128xf32> to vector<1x32xf32>
    %24 = vector.extract_strided_slice %21 {offsets = [2, 0], sizes = [1, 128], strides = [1, 1]} : vector<8x128xf32> to vector<1x128xf32>
    %25 = vector.extract_strided_slice %21 {offsets = [3, 0], sizes = [1, 32], strides = [1, 1]} : vector<8x128xf32> to vector<1x32xf32>
    %26 = vector.extract_strided_slice %21 {offsets = [4, 0], sizes = [1, 32], strides = [1, 1]} : vector<8x128xf32> to vector<1x32xf32>
    %27 = vector.extract_strided_slice %21 {offsets = [5, 0], sizes = [1, 32], strides = [1, 1]} : vector<8x128xf32> to vector<1x32xf32>
    %28 = vector.extract_strided_slice %21 {offsets = [6, 0], sizes = [1, 32], strides = [1, 1]} : vector<8x128xf32> to vector<1x32xf32>
    %29 = vector.extract_strided_slice %21 {offsets = [7, 0], sizes = [1, 32], strides = [1, 1]} : vector<8x128xf32> to vector<1x32xf32>
    %cst_25 = arith.constant dense<0.000000e+00> : vector<16x128xf32>
    %30 = tpu.matmul %9, %13, %cst_25 {dimension_numbers = #tpu.dot_dimension_numbers<[1], [0], [0], [1], [0, 0, 1, 1], [], []>} : vector<16x32xf32>, vector<32x128xf32>, vector<16x128xf32> -> vector<16x128xf32>
    %31 = vector.broadcast %22 : vector<1x128xf32> to vector<16x128xf32>
    %32 = arith.addf %30, %31 : vector<16x128xf32>
    %33 = vector.extract_strided_slice %32 {offsets = [0, 0], sizes = [16, 32], strides = [1, 1]} : vector<16x128xf32> to vector<16x32xf32>
    %34 = vector.extract_strided_slice %32 {offsets = [0, 32], sizes = [16, 32], strides = [1, 1]} : vector<16x128xf32> to vector<16x32xf32>
    %35 = vector.extract_strided_slice %32 {offsets = [0, 64], sizes = [16, 32], strides = [1, 1]} : vector<16x128xf32> to vector<16x32xf32>
    %36 = tpu.concatenate %33, %33, %33, %33 in 0 : vector<16x32xf32>, vector<16x32xf32>, vector<16x32xf32>, vector<16x32xf32> -> vector<64x32xf32>
    %37 = arith.mulf %36, %10 : vector<64x32xf32>
    %cst_26 = arith.constant dense<0.000000e+00> : vector<64x16xf32>
    %38 = tpu.matmul %37, %34, %cst_26 {dimension_numbers = #tpu.dot_dimension_numbers<[1], [1], [0], [0], [0, 0, 1, 0], [], []>} : vector<64x32xf32>, vector<16x32xf32>, vector<64x16xf32> -> vector<64x16xf32>
    %cst_27 = arith.constant 0.353553385 : f32
    %39 = vector.broadcast %cst_27 : f32 to vector<64x16xf32>
    %40 = arith.mulf %38, %39 : vector<64x16xf32>
    %41 = arith.addf %40, %11 : vector<64x16xf32>
    %cst_28 = arith.constant dense<0xFF800000> : vector<64xf32>
    %42 = vector.multi_reduction <maximumf>, %41, %cst_28 [1] : vector<64x16xf32> to vector<64xf32>
    %43 = vector.shape_cast %42 : vector<64xf32> to vector<64x1xf32>
    %44 = vector.broadcast %43 : vector<64x1xf32> to vector<64x16xf32>
    %45 = arith.subf %41, %44 : vector<64x16xf32>
    %46 = math.exp %45 : vector<64x16xf32>
    %cst_29 = arith.constant dense<0.000000e+00> : vector<64xf32>
    %47 = vector.multi_reduction <add>, %46, %cst_29 [1] : vector<64x16xf32> to vector<64xf32>
    %48 = vector.shape_cast %47 : vector<64xf32> to vector<64x1xf32>
    %49 = vector.broadcast %48 : vector<64x1xf32> to vector<64x16xf32>
    %50 = arith.divf %46, %49 : vector<64x16xf32>
    %cst_30 = arith.constant dense<0.000000e+00> : vector<64x32xf32>
    %51 = tpu.matmul %50, %35, %cst_30 {dimension_numbers = #tpu.dot_dimension_numbers<[1], [0], [0], [1], [0, 0, 1, 1], [], []>} : vector<64x16xf32>, vector<16x32xf32>, vector<64x32xf32> -> vector<64x32xf32>
    %52 = arith.mulf %51, %10 : vector<64x32xf32>
    %53 = vector.extract_strided_slice %52 {offsets = [0, 0], sizes = [16, 32], strides = [1, 1]} : vector<64x32xf32> to vector<16x32xf32>
    %54 = vector.extract_strided_slice %52 {offsets = [16, 0], sizes = [16, 32], strides = [1, 1]} : vector<64x32xf32> to vector<16x32xf32>
    %55 = arith.addf %53, %54 : vector<16x32xf32>
    %56 = vector.extract_strided_slice %52 {offsets = [32, 0], sizes = [16, 32], strides = [1, 1]} : vector<64x32xf32> to vector<16x32xf32>
    %57 = arith.addf %55, %56 : vector<16x32xf32>
    %58 = vector.extract_strided_slice %52 {offsets = [48, 0], sizes = [16, 32], strides = [1, 1]} : vector<64x32xf32> to vector<16x32xf32>
    %59 = arith.addf %57, %58 : vector<16x32xf32>
    %cst_31 = arith.constant dense<0.000000e+00> : vector<16x128xf32>
    %60 = tpu.matmul %59, %15, %cst_31 {dimension_numbers = #tpu.dot_dimension_numbers<[1], [0], [0], [1], [0, 0, 1, 1], [], []>} : vector<16x32xf32>, vector<32x128xf32>, vector<16x128xf32> -> vector<16x128xf32>
    %61 = vector.extract_strided_slice %60 {offsets = [0, 0], sizes = [16, 32], strides = [1, 1]} : vector<16x128xf32> to vector<16x32xf32>
    %62 = vector.broadcast %23 : vector<1x32xf32> to vector<16x32xf32>
    %63 = arith.addf %61, %62 : vector<16x32xf32>
    %64 = arith.addf %9, %63 : vector<16x32xf32>
    %cst_32 = arith.constant dense<0.000000e+00> : vector<16xf32>
    %65 = vector.multi_reduction <add>, %64, %cst_32 [1] : vector<16x32xf32> to vector<16xf32>
    %66 = vector.shape_cast %65 : vector<16xf32> to vector<16x1xf32>
    %cst_33 = arith.constant 3.200000e+01 : f32
    %67 = vector.broadcast %cst_33 : f32 to vector<16x1xf32>
    %68 = arith.divf %66, %67 : vector<16x1xf32>
    %69 = vector.broadcast %68 : vector<16x1xf32> to vector<16x32xf32>
    %70 = arith.subf %64, %69 : vector<16x32xf32>
    %71 = arith.mulf %70, %70 : vector<16x32xf32>
    %cst_34 = arith.constant dense<0.000000e+00> : vector<16xf32>
    %72 = vector.multi_reduction <add>, %71, %cst_34 [1] : vector<16x32xf32> to vector<16xf32>
    %73 = vector.shape_cast %72 : vector<16xf32> to vector<16x1xf32>
    %cst_35 = arith.constant 3.200000e+01 : f32
    %74 = vector.broadcast %cst_35 : f32 to vector<16x1xf32>
    %75 = arith.divf %73, %74 : vector<16x1xf32>
    %76 = vector.broadcast %68 : vector<16x1xf32> to vector<16x32xf32>
    %77 = arith.subf %64, %76 : vector<16x32xf32>
    %cst_36 = arith.constant 9.99999974E-6 : f32
    %78 = vector.broadcast %cst_36 : f32 to vector<16x1xf32>
    %79 = arith.addf %75, %78 : vector<16x1xf32>
    %80 = math.rsqrt %79 : vector<16x1xf32>
    %81 = vector.broadcast %80 : vector<16x1xf32> to vector<16x32xf32>
    %82 = arith.mulf %77, %81 : vector<16x32xf32>
    %83 = vector.broadcast %26 : vector<1x32xf32> to vector<16x32xf32>
    %84 = arith.mulf %82, %83 : vector<16x32xf32>
    %85 = vector.broadcast %27 : vector<1x32xf32> to vector<16x32xf32>
    %86 = arith.addf %84, %85 : vector<16x32xf32>
    %cst_37 = arith.constant dense<0.000000e+00> : vector<16x128xf32>
    %87 = tpu.matmul %86, %17, %cst_37 {dimension_numbers = #tpu.dot_dimension_numbers<[1], [0], [0], [1], [0, 0, 1, 1], [], []>} : vector<16x32xf32>, vector<32x128xf32>, vector<16x128xf32> -> vector<16x128xf32>
    %88 = vector.broadcast %24 : vector<1x128xf32> to vector<16x128xf32>
    %89 = arith.addf %87, %88 : vector<16x128xf32>
    %cst_38 = arith.constant 0.000000e+00 : f32
    %90 = vector.broadcast %cst_38 : f32 to vector<16x128xf32>
    %91 = arith.maximumf %89, %90 : vector<16x128xf32>
    %92 = vector.extract_strided_slice %91 {offsets = [0, 0], sizes = [16, 64], strides = [1, 1]} : vector<16x128xf32> to vector<16x64xf32>
    %cst_39 = arith.constant dense<0.000000e+00> : vector<16x128xf32>
    %93 = tpu.matmul %92, %19, %cst_39 {dimension_numbers = #tpu.dot_dimension_numbers<[1], [0], [0], [1], [0, 0, 1, 1], [], []>} : vector<16x64xf32>, vector<64x128xf32>, vector<16x128xf32> -> vector<16x128xf32>
    %94 = vector.extract_strided_slice %93 {offsets = [0, 0], sizes = [16, 32], strides = [1, 1]} : vector<16x128xf32> to vector<16x32xf32>
    %95 = vector.broadcast %25 : vector<1x32xf32> to vector<16x32xf32>
    %96 = arith.addf %94, %95 : vector<16x32xf32>
    %97 = arith.addf %86, %96 : vector<16x32xf32>
    %cst_40 = arith.constant dense<0.000000e+00> : vector<16xf32>
    %98 = vector.multi_reduction <add>, %97, %cst_40 [1] : vector<16x32xf32> to vector<16xf32>
    %99 = vector.shape_cast %98 : vector<16xf32> to vector<16x1xf32>
    %cst_41 = arith.constant 3.200000e+01 : f32
    %100 = vector.broadcast %cst_41 : f32 to vector<16x1xf32>
    %101 = arith.divf %99, %100 : vector<16x1xf32>
    %102 = vector.broadcast %101 : vector<16x1xf32> to vector<16x32xf32>
    %103 = arith.subf %97, %102 : vector<16x32xf32>
    %104 = arith.mulf %103, %103 : vector<16x32xf32>
    %cst_42 = arith.constant dense<0.000000e+00> : vector<16xf32>
    %105 = vector.multi_reduction <add>, %104, %cst_42 [1] : vector<16x32xf32> to vector<16xf32>
    %106 = vector.shape_cast %105 : vector<16xf32> to vector<16x1xf32>
    %cst_43 = arith.constant 3.200000e+01 : f32
    %107 = vector.broadcast %cst_43 : f32 to vector<16x1xf32>
    %108 = arith.divf %106, %107 : vector<16x1xf32>
    %109 = vector.broadcast %101 : vector<16x1xf32> to vector<16x32xf32>
    %110 = arith.subf %97, %109 : vector<16x32xf32>
    %cst_44 = arith.constant 9.99999974E-6 : f32
    %111 = vector.broadcast %cst_44 : f32 to vector<16x1xf32>
    %112 = arith.addf %108, %111 : vector<16x1xf32>
    %113 = math.rsqrt %112 : vector<16x1xf32>
    %114 = vector.broadcast %113 : vector<16x1xf32> to vector<16x32xf32>
    %115 = arith.mulf %110, %114 : vector<16x32xf32>
    %116 = vector.broadcast %28 : vector<1x32xf32> to vector<16x32xf32>
    %117 = arith.mulf %115, %116 : vector<16x32xf32>
    %118 = vector.broadcast %29 : vector<1x32xf32> to vector<16x32xf32>
    %119 = arith.addf %117, %118 : vector<16x32xf32>
    %c1_45 = arith.constant 1 : index
    %c0_46 = arith.constant 0 : index
    %c0_47 = arith.constant 0 : index
    %c0_48 = arith.constant 0 : index
    %120 = vector.load %arg6[%c1_45, %c0_46, %c0_47, %c0_48] : memref<2x4x64x128xf32, #tpu.memory_space<vmem>>, vector<1x1x32x128xf32>
    %121 = vector.shape_cast %120 : vector<1x1x32x128xf32> to vector<32x128xf32>
    %c1_49 = arith.constant 1 : index
    %c1_50 = arith.constant 1 : index
    %c0_51 = arith.constant 0 : index
    %c0_52 = arith.constant 0 : index
    %122 = vector.load %arg6[%c1_49, %c1_50, %c0_51, %c0_52] : memref<2x4x64x128xf32, #tpu.memory_space<vmem>>, vector<1x1x32x128xf32>
    %123 = vector.shape_cast %122 : vector<1x1x32x128xf32> to vector<32x128xf32>
    %c1_53 = arith.constant 1 : index
    %c2_54 = arith.constant 2 : index
    %c0_55 = arith.constant 0 : index
    %c0_56 = arith.constant 0 : index
    %124 = vector.load %arg6[%c1_53, %c2_54, %c0_55, %c0_56] : memref<2x4x64x128xf32, #tpu.memory_space<vmem>>, vector<1x1x32x128xf32>
    %125 = vector.shape_cast %124 : vector<1x1x32x128xf32> to vector<32x128xf32>
    %c1_57 = arith.constant 1 : index
    %c3_58 = arith.constant 3 : index
    %c0_59 = arith.constant 0 : index
    %c0_60 = arith.constant 0 : index
    %126 = vector.load %arg6[%c1_57, %c3_58, %c0_59, %c0_60] : memref<2x4x64x128xf32, #tpu.memory_space<vmem>>, vector<1x1x64x128xf32>
    %127 = vector.shape_cast %126 : vector<1x1x64x128xf32> to vector<64x128xf32>
    %c1_61 = arith.constant 1 : index
    %c0_62 = arith.constant 0 : index
    %c0_63 = arith.constant 0 : index
    %128 = vector.load %arg7[%c1_61, %c0_62, %c0_63] : memref<2x8x128xf32, #tpu.memory_space<vmem>>, vector<1x8x128xf32>
    %129 = vector.shape_cast %128 : vector<1x8x128xf32> to vector<8x128xf32>
    %130 = vector.extract_strided_slice %129 {offsets = [0, 0], sizes = [1, 128], strides = [1, 1]} : vector<8x128xf32> to vector<1x128xf32>
    %131 = vector.extract_strided_slice %129 {offsets = [1, 0], sizes = [1, 32], strides = [1, 1]} : vector<8x128xf32> to vector<1x32xf32>
    %132 = vector.extract_strided_slice %129 {offsets = [2, 0], sizes = [1, 128], strides = [1, 1]} : vector<8x128xf32> to vector<1x128xf32>
    %133 = vector.extract_strided_slice %129 {offsets = [3, 0], sizes = [1, 32], strides = [1, 1]} : vector<8x128xf32> to vector<1x32xf32>
    %134 = vector.extract_strided_slice %129 {offsets = [4, 0], sizes = [1, 32], strides = [1, 1]} : vector<8x128xf32> to vector<1x32xf32>
    %135 = vector.extract_strided_slice %129 {offsets = [5, 0], sizes = [1, 32], strides = [1, 1]} : vector<8x128xf32> to vector<1x32xf32>
    %136 = vector.extract_strided_slice %129 {offsets = [6, 0], sizes = [1, 32], strides = [1, 1]} : vector<8x128xf32> to vector<1x32xf32>
    %137 = vector.extract_strided_slice %129 {offsets = [7, 0], sizes = [1, 32], strides = [1, 1]} : vector<8x128xf32> to vector<1x32xf32>
    %cst_64 = arith.constant dense<0.000000e+00> : vector<16x128xf32>
    %138 = tpu.matmul %119, %121, %cst_64 {dimension_numbers = #tpu.dot_dimension_numbers<[1], [0], [0], [1], [0, 0, 1, 1], [], []>} : vector<16x32xf32>, vector<32x128xf32>, vector<16x128xf32> -> vector<16x128xf32>
    %139 = vector.broadcast %130 : vector<1x128xf32> to vector<16x128xf32>
    %140 = arith.addf %138, %139 : vector<16x128xf32>
    %141 = vector.extract_strided_slice %140 {offsets = [0, 0], sizes = [16, 32], strides = [1, 1]} : vector<16x128xf32> to vector<16x32xf32>
    %142 = vector.extract_strided_slice %140 {offsets = [0, 32], sizes = [16, 32], strides = [1, 1]} : vector<16x128xf32> to vector<16x32xf32>
    %143 = vector.extract_strided_slice %140 {offsets = [0, 64], sizes = [16, 32], strides = [1, 1]} : vector<16x128xf32> to vector<16x32xf32>
    %144 = tpu.concatenate %141, %141, %141, %141 in 0 : vector<16x32xf32>, vector<16x32xf32>, vector<16x32xf32>, vector<16x32xf32> -> vector<64x32xf32>
    %145 = arith.mulf %144, %10 : vector<64x32xf32>
    %cst_65 = arith.constant dense<0.000000e+00> : vector<64x16xf32>
    %146 = tpu.matmul %145, %142, %cst_65 {dimension_numbers = #tpu.dot_dimension_numbers<[1], [1], [0], [0], [0, 0, 1, 0], [], []>} : vector<64x32xf32>, vector<16x32xf32>, vector<64x16xf32> -> vector<64x16xf32>
    %cst_66 = arith.constant 0.353553385 : f32
    %147 = vector.broadcast %cst_66 : f32 to vector<64x16xf32>
    %148 = arith.mulf %146, %147 : vector<64x16xf32>
    %149 = arith.addf %148, %11 : vector<64x16xf32>
    %cst_67 = arith.constant dense<0xFF800000> : vector<64xf32>
    %150 = vector.multi_reduction <maximumf>, %149, %cst_67 [1] : vector<64x16xf32> to vector<64xf32>
    %151 = vector.shape_cast %150 : vector<64xf32> to vector<64x1xf32>
    %152 = vector.broadcast %151 : vector<64x1xf32> to vector<64x16xf32>
    %153 = arith.subf %149, %152 : vector<64x16xf32>
    %154 = math.exp %153 : vector<64x16xf32>
    %cst_68 = arith.constant dense<0.000000e+00> : vector<64xf32>
    %155 = vector.multi_reduction <add>, %154, %cst_68 [1] : vector<64x16xf32> to vector<64xf32>
    %156 = vector.shape_cast %155 : vector<64xf32> to vector<64x1xf32>
    %157 = vector.broadcast %156 : vector<64x1xf32> to vector<64x16xf32>
    %158 = arith.divf %154, %157 : vector<64x16xf32>
    %cst_69 = arith.constant dense<0.000000e+00> : vector<64x32xf32>
    %159 = tpu.matmul %158, %143, %cst_69 {dimension_numbers = #tpu.dot_dimension_numbers<[1], [0], [0], [1], [0, 0, 1, 1], [], []>} : vector<64x16xf32>, vector<16x32xf32>, vector<64x32xf32> -> vector<64x32xf32>
    %160 = arith.mulf %159, %10 : vector<64x32xf32>
    %161 = vector.extract_strided_slice %160 {offsets = [0, 0], sizes = [16, 32], strides = [1, 1]} : vector<64x32xf32> to vector<16x32xf32>
    %162 = vector.extract_strided_slice %160 {offsets = [16, 0], sizes = [16, 32], strides = [1, 1]} : vector<64x32xf32> to vector<16x32xf32>
    %163 = arith.addf %161, %162 : vector<16x32xf32>
    %164 = vector.extract_strided_slice %160 {offsets = [32, 0], sizes = [16, 32], strides = [1, 1]} : vector<64x32xf32> to vector<16x32xf32>
    %165 = arith.addf %163, %164 : vector<16x32xf32>
    %166 = vector.extract_strided_slice %160 {offsets = [48, 0], sizes = [16, 32], strides = [1, 1]} : vector<64x32xf32> to vector<16x32xf32>
    %167 = arith.addf %165, %166 : vector<16x32xf32>
    %cst_70 = arith.constant dense<0.000000e+00> : vector<16x128xf32>
    %168 = tpu.matmul %167, %123, %cst_70 {dimension_numbers = #tpu.dot_dimension_numbers<[1], [0], [0], [1], [0, 0, 1, 1], [], []>} : vector<16x32xf32>, vector<32x128xf32>, vector<16x128xf32> -> vector<16x128xf32>
    %169 = vector.extract_strided_slice %168 {offsets = [0, 0], sizes = [16, 32], strides = [1, 1]} : vector<16x128xf32> to vector<16x32xf32>
    %170 = vector.broadcast %131 : vector<1x32xf32> to vector<16x32xf32>
    %171 = arith.addf %169, %170 : vector<16x32xf32>
    %172 = arith.addf %119, %171 : vector<16x32xf32>
    %cst_71 = arith.constant dense<0.000000e+00> : vector<16xf32>
    %173 = vector.multi_reduction <add>, %172, %cst_71 [1] : vector<16x32xf32> to vector<16xf32>
    %174 = vector.shape_cast %173 : vector<16xf32> to vector<16x1xf32>
    %cst_72 = arith.constant 3.200000e+01 : f32
    %175 = vector.broadcast %cst_72 : f32 to vector<16x1xf32>
    %176 = arith.divf %174, %175 : vector<16x1xf32>
    %177 = vector.broadcast %176 : vector<16x1xf32> to vector<16x32xf32>
    %178 = arith.subf %172, %177 : vector<16x32xf32>
    %179 = arith.mulf %178, %178 : vector<16x32xf32>
    %cst_73 = arith.constant dense<0.000000e+00> : vector<16xf32>
    %180 = vector.multi_reduction <add>, %179, %cst_73 [1] : vector<16x32xf32> to vector<16xf32>
    %181 = vector.shape_cast %180 : vector<16xf32> to vector<16x1xf32>
    %cst_74 = arith.constant 3.200000e+01 : f32
    %182 = vector.broadcast %cst_74 : f32 to vector<16x1xf32>
    %183 = arith.divf %181, %182 : vector<16x1xf32>
    %184 = vector.broadcast %176 : vector<16x1xf32> to vector<16x32xf32>
    %185 = arith.subf %172, %184 : vector<16x32xf32>
    %cst_75 = arith.constant 9.99999974E-6 : f32
    %186 = vector.broadcast %cst_75 : f32 to vector<16x1xf32>
    %187 = arith.addf %183, %186 : vector<16x1xf32>
    %188 = math.rsqrt %187 : vector<16x1xf32>
    %189 = vector.broadcast %188 : vector<16x1xf32> to vector<16x32xf32>
    %190 = arith.mulf %185, %189 : vector<16x32xf32>
    %191 = vector.broadcast %134 : vector<1x32xf32> to vector<16x32xf32>
    %192 = arith.mulf %190, %191 : vector<16x32xf32>
    %193 = vector.broadcast %135 : vector<1x32xf32> to vector<16x32xf32>
    %194 = arith.addf %192, %193 : vector<16x32xf32>
    %cst_76 = arith.constant dense<0.000000e+00> : vector<16x128xf32>
    %195 = tpu.matmul %194, %125, %cst_76 {dimension_numbers = #tpu.dot_dimension_numbers<[1], [0], [0], [1], [0, 0, 1, 1], [], []>} : vector<16x32xf32>, vector<32x128xf32>, vector<16x128xf32> -> vector<16x128xf32>
    %196 = vector.broadcast %132 : vector<1x128xf32> to vector<16x128xf32>
    %197 = arith.addf %195, %196 : vector<16x128xf32>
    %cst_77 = arith.constant 0.000000e+00 : f32
    %198 = vector.broadcast %cst_77 : f32 to vector<16x128xf32>
    %199 = arith.maximumf %197, %198 : vector<16x128xf32>
    %200 = vector.extract_strided_slice %199 {offsets = [0, 0], sizes = [16, 64], strides = [1, 1]} : vector<16x128xf32> to vector<16x64xf32>
    %cst_78 = arith.constant dense<0.000000e+00> : vector<16x128xf32>
    %201 = tpu.matmul %200, %127, %cst_78 {dimension_numbers = #tpu.dot_dimension_numbers<[1], [0], [0], [1], [0, 0, 1, 1], [], []>} : vector<16x64xf32>, vector<64x128xf32>, vector<16x128xf32> -> vector<16x128xf32>
    %202 = vector.extract_strided_slice %201 {offsets = [0, 0], sizes = [16, 32], strides = [1, 1]} : vector<16x128xf32> to vector<16x32xf32>
    %203 = vector.broadcast %133 : vector<1x32xf32> to vector<16x32xf32>
    %204 = arith.addf %202, %203 : vector<16x32xf32>
    %205 = arith.addf %194, %204 : vector<16x32xf32>
    %cst_79 = arith.constant dense<0.000000e+00> : vector<16xf32>
    %206 = vector.multi_reduction <add>, %205, %cst_79 [1] : vector<16x32xf32> to vector<16xf32>
    %207 = vector.shape_cast %206 : vector<16xf32> to vector<16x1xf32>
    %cst_80 = arith.constant 3.200000e+01 : f32
    %208 = vector.broadcast %cst_80 : f32 to vector<16x1xf32>
    %209 = arith.divf %207, %208 : vector<16x1xf32>
    %210 = vector.broadcast %209 : vector<16x1xf32> to vector<16x32xf32>
    %211 = arith.subf %205, %210 : vector<16x32xf32>
    %212 = arith.mulf %211, %211 : vector<16x32xf32>
    %cst_81 = arith.constant dense<0.000000e+00> : vector<16xf32>
    %213 = vector.multi_reduction <add>, %212, %cst_81 [1] : vector<16x32xf32> to vector<16xf32>
    %214 = vector.shape_cast %213 : vector<16xf32> to vector<16x1xf32>
    %cst_82 = arith.constant 3.200000e+01 : f32
    %215 = vector.broadcast %cst_82 : f32 to vector<16x1xf32>
    %216 = arith.divf %214, %215 : vector<16x1xf32>
    %217 = vector.broadcast %209 : vector<16x1xf32> to vector<16x32xf32>
    %218 = arith.subf %205, %217 : vector<16x32xf32>
    %cst_83 = arith.constant 9.99999974E-6 : f32
    %219 = vector.broadcast %cst_83 : f32 to vector<16x1xf32>
    %220 = arith.addf %216, %219 : vector<16x1xf32>
    %221 = math.rsqrt %220 : vector<16x1xf32>
    %222 = vector.broadcast %221 : vector<16x1xf32> to vector<16x32xf32>
    %223 = arith.mulf %218, %222 : vector<16x32xf32>
    %224 = vector.broadcast %136 : vector<1x32xf32> to vector<16x32xf32>
    %225 = arith.mulf %223, %224 : vector<16x32xf32>
    %226 = vector.broadcast %137 : vector<1x32xf32> to vector<16x32xf32>
    %227 = arith.addf %225, %226 : vector<16x32xf32>
    %cst_84 = arith.constant 0.000000e+00 : f32
    %228 = vector.broadcast %cst_84 : f32 to vector<16x96xf32>
    %229 = tpu.concatenate %227, %228 in 1 : vector<16x32xf32>, vector<16x96xf32> -> vector<16x128xf32>
    %c0_85 = arith.constant 0 : index
    %c0_86 = arith.constant 0 : index
    %230 = vector.load %arg8[%c0_85, %c0_86] : memref<16x128xf32, #tpu.memory_space<vmem>>, vector<16x128xf32>
    tpu.vector_store %arg8[%c0_85, %c0_86], %229 {strides = array<i32>} : memref<16x128xf32, #tpu.memory_space<vmem>>, vector<16x128xf32>,
    return
  }
  func.func @transform_0(%arg0: i32) -> (i32, i32) {
    %c0_i32 = arith.constant 0 : i32
    %c0_i32_0 = arith.constant 0 : i32
    %c0_i32_1 = arith.constant 0 : i32
    return %c0_i32, %c0_i32_0 : i32, i32
  }
  func.func @transform_1(%arg0: i32) -> (i32, i32) {
    %c0_i32 = arith.constant 0 : i32
    %c0_i32_0 = arith.constant 0 : i32
    %c0_i32_1 = arith.constant 0 : i32
    return %c0_i32, %c0_i32_0 : i32, i32
  }
  func.func @transform_2(%arg0: i32) -> (i32, i32) {
    %c0_i32 = arith.constant 0 : i32
    %c0_i32_0 = arith.constant 0 : i32
    %c0_i32_1 = arith.constant 0 : i32
    return %c0_i32, %c0_i32_0 : i32, i32
  }
  func.func @transform_3(%arg0: i32) -> (i32, i32) {
    %c0_i32 = arith.constant 0 : i32
    %c0_i32_0 = arith.constant 0 : i32
    %c0_i32_1 = arith.constant 0 : i32
    return %c0_i32, %c0_i32_0 : i32, i32
  }
  func.func @transform_4(%arg0: i32) -> (i32, i32) {
    %c0_i32 = arith.constant 0 : i32
    %c0_i32_0 = arith.constant 0 : i32
    %c0_i32_1 = arith.constant 0 : i32
    return %c0_i32, %c0_i32_0 : i32, i32
  }
  func.func @transform_5(%arg0: i32) -> (i32, i32, i32, i32) {
    %c0_i32 = arith.constant 0 : i32
    %c0_i32_0 = arith.constant 0 : i32
    %c0_i32_1 = arith.constant 0 : i32
    %c0_i32_2 = arith.constant 0 : i32
    %c0_i32_3 = arith.constant 0 : i32
    return %c0_i32, %c0_i32_0, %c0_i32_1, %c0_i32_2 : i32, i32, i32, i32
  }
  func.func @transform_6(%arg0: i32) -> (i32, i32, i32) {
    %c0_i32 = arith.constant 0 : i32
    %c0_i32_0 = arith.constant 0 : i32
    %c0_i32_1 = arith.constant 0 : i32
    %c0_i32_2 = arith.constant 0 : i32
    return %c0_i32, %c0_i32_0, %c0_i32_1 : i32, i32, i32
  }
  func.func @transform_7(%arg0: i32) -> (i32, i32) {
    %c0_i32 = arith.constant 0 : i32
    %c0_i32_0 = arith.constant 0 : i32
    %c0_i32_1 = arith.constant 0 : i32
    return %c0_i32, %c0_i32_0 : i32, i32
  }
}

</mosaic_0001>

<llo_original>
// kernel: tpu_custom_call.1
$region0: #{tpu_custom_call.1}
  #allocation0 [shape = 'u32[]', space=smem, size = 0x4, offset = 0x4, fixed_abs, tag = 'smem constant byte address 0x4 - core index']
  #allocation1 [shape = 'u32[72,128]{1,0:T(1,128)}', space=vmem, size = 0x9000, scoped, tag = 'internal scratch']
  %s0 = inlined_call_operand.vmem [shape: s32[16,1], index: 0, kind: input, shape index: {}]
  %s1 = inlined_call_operand.vmem [shape: f32[128,32], index: 1, kind: input, shape index: {}]
  %s2 = inlined_call_operand.vmem [shape: f32[16,32], index: 2, kind: input, shape index: {}]
  %s3 = inlined_call_operand.vmem [shape: f32[64,32], index: 3, kind: input, shape index: {}]
  %s4 = inlined_call_operand.vmem [shape: f32[64,16], index: 4, kind: input, shape index: {}]
  %s5 = inlined_call_operand.hbm [shape: f32[2,4,64,128], index: 5, kind: input, shape index: {}]
  %s6 = inlined_call_operand.vmem [shape: f32[2,8,128], index: 6, kind: input, shape index: {}]
  %s7 = inlined_call_operand.hbm [shape: f32[16,128], index: 7, kind: output, shape index: {}]
  %s8 = sld [smem:[#allocation0]]
  $region42: #{tpu_custom_call.1} parent=0
    _
  %s10 = ssub.s32 1, %s8
  %s11 = scalar_select 0, %s10, %s8
  $region1: #{tpu_custom_call.1} parent=0
    #allocation2 [shape = 'u8[262144]{0}', space=vmem, size = 0x40000, scoped, tag = 'input window, operand 5, single buffered']
    #allocation3 [shape = 's32[1]{0}', space=sflag, size = 0x4, scoped, tag = 'scoped memory for tpu_custom_call.1']
    #allocation4 [shape = 's32[1]{0}', space=sflag, size = 0x4, scoped, tag = 'scoped memory for tpu_custom_call.1']
    #allocation5 [shape = 'u8[8192]{0}', space=vmem, size = 0x2000, scoped, tag = 'output window, operand 0, single buffered']
    %12 = vsyncpa [#allocation3], 0
    %13 = vsyncpa [#allocation4], 0
    // Predicated region
    $region2: #{tpu_custom_call.1} parent=1 // pred_check
      _
    $region3: #{tpu_custom_call.1} parent=1 // pred_check_branch
      %15 = sbr.rel (0) target = $region5
    $region4: #{tpu_custom_call.1} parent=1 // pred_region
      _
    $region5: #{tpu_custom_call.1} parent=1 // pred_fallthru
      _
    // Predicated region
    $region6: #{tpu_custom_call.1} parent=1 // pred_check
      _
    $region7: #{tpu_custom_call.1} parent=1 // pred_check_branch
      %17 = sbr.rel (0) target = $region9
    $region8: #{tpu_custom_call.1} parent=1 // pred_region
      _
    $region9: #{tpu_custom_call.1} parent=1 // pred_fallthru
      _
    // Predicated region
    $region10: #{tpu_custom_call.1} parent=1 // pred_check
      _
    $region11: #{tpu_custom_call.1} parent=1 // pred_check_branch
      %19 = sbr.rel (0) target = $region13
    $region12: #{tpu_custom_call.1} parent=1 // pred_region
      _
    $region13: #{tpu_custom_call.1} parent=1 // pred_fallthru
      _
    // Predicated region
    $region14: #{tpu_custom_call.1} parent=1 // pred_check
      _
    $region15: #{tpu_custom_call.1} parent=1 // pred_check_branch
      %21 = sbr.rel (0) target = $region17
    $region16: #{tpu_custom_call.1} parent=1 // pred_region
      _
    $region17: #{tpu_custom_call.1} parent=1 // pred_fallthru
      _
    // Predicated region
    $region18: #{tpu_custom_call.1} parent=1 // pred_check
      _
    $region19: #{tpu_custom_call.1} parent=1 // pred_check_branch
      %23 = sbr.rel (0) target = $region21
    $region20: #{tpu_custom_call.1} parent=1 // pred_region
      _
    $region21: #{tpu_custom_call.1} parent=1 // pred_fallthru
      _
    // Predicated region
    $region22: #{tpu_custom_call.1} parent=1 // pred_check
      _
    $region23: #{tpu_custom_call.1} parent=1 // pred_check_branch
      %25 = sbr.rel (0) target = $region25
    $region24: #{tpu_custom_call.1} parent=1 // pred_region
      %27 = vsyncadd [#allocation3], 0
      %s28 = sshll.u32 %s5, 4
      %s29 = int_to_ptr.hbm [resolvable:$true] %s28
      %s30 = sshll.u32 [#allocation2], 4
      %s31 = int_to_ptr.vmem [resolvable:$true] %s30
      %36 = dma.hbm_to_vmem [thread:$0]  %s29, 8192, %s31, [#allocation3], 128, 128, 8
    $region25: #{tpu_custom_call.1} parent=1 // pred_fallthru
      _
    // Predicated region
    $region26: #{tpu_custom_call.1} parent=1 // pred_check
      _
    $region27: #{tpu_custom_call.1} parent=1 // pred_check_branch
      %38 = sbr.rel (0) target = $region29
    $region28: #{tpu_custom_call.1} parent=1 // pred_region
      _
    $region29: #{tpu_custom_call.1} parent=1 // pred_fallthru
      _
    // Predicated region
    $region30: #{tpu_custom_call.1} parent=1 // pred_check
      _
    $region31: #{tpu_custom_call.1} parent=1 // pred_check_branch
      %40 = sbr.rel (0) target = $region33
    $region32: #{tpu_custom_call.1} parent=1 // pred_region
      %42 = dma.done [#allocation3], 8192
    $region33: #{tpu_custom_call.1} parent=1 // pred_fallthru
      _
    %v43 = vld [vmem:[%s0] sm:$0xff]
    %v44 = vld [vmem:[%s0 + $0x8] sm:$0xff]
    %v45 = vlaneseq
    %v46 = vand.u32 %v45, 127
    %47 = vset.pattern.permute.xlu0 0
    %48 = vperm.xlu0 %47, %v43
    %v49 = vpop.permute.xlu0 %48
    %50 = vset.pattern.permute.xlu0 0
    %51 = vperm.xlu0 %50, %v44
    %v52 = vpop.permute.xlu0 %51
    %vm53 = vcmp.eq.s32.totalorder %v46, %v49
    %vm54 = vcmp.eq.s32.totalorder %v46, %v52
    %v55 = vsel %vm53, 1, 0
    %v56 = vsel %vm54, 1, 0
    %v57 = vcvt.s32.f32 %v55
    %v58 = vcvt.s32.f32 %v56
    %v59 = vld [vmem:[%s1] sm:$0xff]
    %v60 = vld [vmem:[%s1 + $0x8] sm:$0xff]
    %v61 = vld [vmem:[%s1 + $0x10] sm:$0xff]
    %v62 = vld [vmem:[%s1 + $0x18] sm:$0xff]
    %v63 = vld [vmem:[%s1 + $0x20] sm:$0xff]
    %v64 = vld [vmem:[%s1 + $0x28] sm:$0xff]
    %v65 = vld [vmem:[%s1 + $0x30] sm:$0xff]
    %v66 = vld [vmem:[%s1 + $0x38] sm:$0xff]
    %v67 = vld [vmem:[%s1 + $0x40] sm:$0xff]
    %v68 = vld [vmem:[%s1 + $0x48] sm:$0xff]
    %v69 = vld [vmem:[%s1 + $0x50] sm:$0xff]
    %v70 = vld [vmem:[%s1 + $0x58] sm:$0xff]
    %v71 = vld [vmem:[%s1 + $0x60] sm:$0xff]
    %v72 = vld [vmem:[%s1 + $0x68] sm:$0xff]
    %v73 = vld [vmem:[%s1 + $0x70] sm:$0xff]
    %v74 = vld [vmem:[%s1 + $0x78] sm:$0xff]
    %v75 = vld [vmem:[%s2] sm:$0xff]
    %v76 = vld [vmem:[%s2 + $0x8] sm:$0xff]
    %77 = vmatpush.msra.mxu0 %v74
    %78 = vmatpush.msra.mxu0 %v73
    %79 = vmatpush.msra.mxu0 %v72
    %80 = vmatpush.msra.mxu0 %v71
    %81 = vmatpush.msra.mxu0 %v70
    %82 = vmatpush.msra.mxu0 %v69
    %83 = vmatpush.msra.mxu0 %v68
    %84 = vmatpush.msra.mxu0 %v67
    %85 = vmatpush.msra.mxu0 %v66
    %86 = vmatpush.msra.mxu0 %v65
    %87 = vmatpush.msra.mxu0 %v64
    %88 = vmatpush.msra.mxu0 %v63
    %89 = vmatpush.msra.mxu0 %v62
    %90 = vmatpush.msra.mxu0 %v61
    %91 = vmatpush.msra.mxu0 %v60
    %92 = vmatpush.msra.mxu0 %v59
    %93 = vmatmul.f32.gmra.mxu0 %v57
    %v94 = vpop.f32.mrf.mxu0
    %v95 = vadd.f32 %v75, %v94
    %96 = vmatmul.f32.gmra.mxu0 %v58
    %v97 = vpop.f32.mrf.mxu0
    %v98 = vadd.f32 %v76, %v97
    %99 = vdwg.mxu0
    %v100 = vld [vmem:[%s3] sm:$0xff]
    %v101 = vld [vmem:[%s3 + $0x8] sm:$0xff]
    %v102 = vld [vmem:[%s3 + $0x10] sm:$0xff]
    %v103 = vld [vmem:[%s3 + $0x18] sm:$0xff]
    %v104 = vld [vmem:[%s3 + $0x20] sm:$0xff]
    %v105 = vld [vmem:[%s3 + $0x28] sm:$0xff]
    %v106 = vld [vmem:[%s3 + $0x30] sm:$0xff]
    %v107 = vld [vmem:[%s3 + $0x38] sm:$0xff]
    %v108 = vld [vmem:[%s4] sm:$0xff]
    %v109 = vld [vmem:[%s4 + $0x8] sm:$0xff]
    %v110 = vld [vmem:[%s4 + $0x10] sm:$0xff]
    %v111 = vld [vmem:[%s4 + $0x18] sm:$0xff]
    %v112 = vld [vmem:[%s4 + $0x20] sm:$0xff]
    %v113 = vld [vmem:[%s4 + $0x28] sm:$0xff]
    %v114 = vld [vmem:[%s4 + $0x30] sm:$0xff]
    %v115 = vld [vmem:[%s4 + $0x38] sm:$0xff]
    %v116 = vld [vmem:[#allocation2] sm:$0xff]
    %v117 = vld [vmem:[#allocation2 + $0x8] sm:$0xff]
    %v118 = vld [vmem:[#allocation2 + $0x10] sm:$0xff]
    %v119 = vld [vmem:[#allocation2 + $0x18] sm:$0xff]
    %s120 = scalar_lea.vmem [#allocation2], 64
    %v121 = vld [vmem:[%s120] sm:$0xff]
    %v122 = vld [vmem:[%s120 + $0x8] sm:$0xff]
    %v123 = vld [vmem:[%s120 + $0x10] sm:$0xff]
    %v124 = vld [vmem:[%s120 + $0x18] sm:$0xff]
    %s125 = scalar_lea.vmem [#allocation2], 128
    %v126 = vld [vmem:[%s125] sm:$0xff]
    %v127 = vld [vmem:[%s125 + $0x8] sm:$0xff]
    %v128 = vld [vmem:[%s125 + $0x10] sm:$0xff]
    %v129 = vld [vmem:[%s125 + $0x18] sm:$0xff]
    %s130 = scalar_lea.vmem [#allocation2], 192
    %v131 = vld [vmem:[%s130] sm:$0xff]
    %v132 = vld [vmem:[%s130 + $0x8] sm:$0xff]
    %v133 = vld [vmem:[%s130 + $0x10] sm:$0xff]
    %v134 = vld [vmem:[%s130 + $0x18] sm:$0xff]
    %v135 = vld [vmem:[%s130 + $0x20] sm:$0xff]
    %v136 = vld [vmem:[%s130 + $0x28] sm:$0xff]
    %v137 = vld [vmem:[%s130 + $0x30] sm:$0xff]
    %v138 = vld [vmem:[%s130 + $0x38] sm:$0xff]
    %v139 = vld [vmem:[%s6] sm:$0xff]
    %v140 = vperm.slane %v139, 0
    %vm141 = vcmask 261120
    %v143 = vsel %vm141, %v95, 0
    %v146 = vsel %vm141, %v98, 0
    %148 = vmatpush.msra.mxu0 0.0
    %149 = vmatpush.msra.mxu0 0.0
    %150 = vmatpush.msra.mxu0 0.0
    %151 = vmatpush.msra.mxu0 0.0
    %152 = vmatpush.msra.mxu0 0.0
    %153 = vmatpush.msra.mxu0 0.0
    %154 = vmatpush.msra.mxu0 0.0
    %155 = vmatpush.msra.mxu0 0.0
    %156 = vmatpush.msra.mxu0 0.0
    %157 = vmatpush.msra.mxu0 0.0
    %158 = vmatpush.msra.mxu0 0.0
    %159 = vmatpush.msra.mxu0 0.0
    %160 = vmatpush.msra.mxu0 %v119
    %161 = vmatpush.msra.mxu0 %v118
    %162 = vmatpush.msra.mxu0 %v117
    %163 = vmatpush.msra.mxu0 %v116
    %164 = vmatmul.f32.gmra.mxu0 %v143
    %v165 = vpop.f32.mrf.mxu0
    %v166 = vadd.f32 %v140, %v165
    %167 = vmatmul.f32.gmra.mxu0 %v146
    %v168 = vpop.f32.mrf.mxu0
    %v169 = vadd.f32 %v140, %v168
    %170 = vdwg.mxu0
    %v171 = vmul.f32 %v166, %v100
    %v172 = vmul.f32 %v169, %v101
    %v173 = vmul.f32 %v166, %v102
    %v174 = vmul.f32 %v169, %v103
    %v175 = vmul.f32 %v166, %v104
    %v176 = vmul.f32 %v169, %v105
    %v177 = vmul.f32 %v166, %v106
    %v178 = vmul.f32 %v169, %v107
    %181 = vrot.lane.b32.xlu0 %v166, 96
    %v182 = vpop.permute.xlu0 %181
    %183 = vrot.lane.b32.xlu0 %v169, 96
    %v184 = vpop.permute.xlu0 %183
    %v186 = vsel %vm141, %v171, 0
    %v189 = vsel %vm141, %v172, 0
    %v192 = vsel %vm141, %v173, 0
    %v195 = vsel %vm141, %v174, 0
    %v198 = vsel %vm141, %v175, 0
    %v201 = vsel %vm141, %v176, 0
    %v204 = vsel %vm141, %v177, 0
    %v207 = vsel %vm141, %v178, 0
    %v209 = vsel %vm141, %v182, 0
    %v211 = vsel %vm141, %v184, 0
    %213 = vmatpush.xpose.msra.mxu0 0.0
    %214 = vmatpush.xpose.msra.mxu0 0.0
    %215 = vmatpush.xpose.msra.mxu0 0.0
    %216 = vmatpush.xpose.msra.mxu0 0.0
    %217 = vmatpush.xpose.msra.mxu0 0.0
    %218 = vmatpush.xpose.msra.mxu0 0.0
    %219 = vmatpush.xpose.msra.mxu0 0.0
    %220 = vmatpush.xpose.msra.mxu0 0.0
    %221 = vmatpush.xpose.msra.mxu0 0.0
    %222 = vmatpush.xpose.msra.mxu0 0.0
    %223 = vmatpush.xpose.msra.mxu0 0.0
    %224 = vmatpush.xpose.msra.mxu0 0.0
    %225 = vmatpush.xpose.msra.mxu0 0.0
    %226 = vmatpush.xpose.msra.mxu0 0.0
    %227 = vmatpush.xpose.msra.mxu0 %v211
    %228 = vmatpush.xpose.msra.mxu0 %v209
    %229 = vmatmul.f32.gmra.mxu0 %v186
    %v230 = vpop.f32.mrf.mxu0
    %v231 = vadd.f32 0.0, %v230
    %232 = vmatmul.f32.gmra.mxu0 %v189
    %v233 = vpop.f32.mrf.mxu0
    %v234 = vadd.f32 0.0, %v233
    %235 = vmatmul.f32.gmra.mxu0 %v192
    %v236 = vpop.f32.mrf.mxu0
    %v237 = vadd.f32 0.0, %v236
    %238 = vmatmul.f32.gmra.mxu0 %v195
    %v239 = vpop.f32.mrf.mxu0
    %v240 = vadd.f32 0.0, %v239
    %241 = vmatmul.f32.gmra.mxu0 %v198
    %v242 = vpop.f32.mrf.mxu0
    %v243 = vadd.f32 0.0, %v242
    %244 = vmatmul.f32.gmra.mxu0 %v201
    %v245 = vpop.f32.mrf.mxu0
    %v246 = vadd.f32 0.0, %v245
    %247 = vmatmul.f32.gmra.mxu0 %v204
    %v248 = vpop.f32.mrf.mxu0
    %v249 = vadd.f32 0.0, %v248
    %250 = vmatmul.f32.gmra.mxu0 %v207
    %v251 = vpop.f32.mrf.mxu0
    %v252 = vadd.f32 0.0, %v251
    %253 = vdwg.mxu0
    %v254 = vmul.f32 %v231, 0.35355338
    %v255 = vmul.f32 %v234, 0.35355338
    %v256 = vmul.f32 %v237, 0.35355338
    %v257 = vmul.f32 %v240, 0.35355338
    %v258 = vmul.f32 %v243, 0.35355338
    %v259 = vmul.f32 %v246, 0.35355338
    %v260 = vmul.f32 %v249, 0.35355338
    %v261 = vmul.f32 %v252, 0.35355338
    %v262 = vadd.f32 %v254, %v108
    %v263 = vadd.f32 %v255, %v109
    %v264 = vadd.f32 %v256, %v110
    %v265 = vadd.f32 %v257, %v111
    %v266 = vadd.f32 %v258, %v112
    %v267 = vadd.f32 %v259, %v113
    %v268 = vadd.f32 %v260, %v114
    %v269 = vadd.f32 %v261, %v115
    %vm270 = vcmask 130048
    %v271 = vsel %vm270, %v262, -inf
    %272 = vmax.xlane.f32.xlu0 %v271
    %v273 = vpop.xlane.xlu0 %272
    %v274 = vsel %vm270, %v263, -inf
    %275 = vmax.xlane.f32.xlu0 %v274
    %v276 = vpop.xlane.xlu0 %275
    %v277 = vsel %vm270, %v264, -inf
    %278 = vmax.xlane.f32.xlu0 %v277
    %v279 = vpop.xlane.xlu0 %278
    %v280 = vsel %vm270, %v265, -inf
    %281 = vmax.xlane.f32.xlu0 %v280
    %v282 = vpop.xlane.xlu0 %281
    %v283 = vsel %vm270, %v266, -inf
    %284 = vmax.xlane.f32.xlu0 %v283
    %v285 = vpop.xlane.xlu0 %284
    %v286 = vsel %vm270, %v267, -inf
    %287 = vmax.xlane.f32.xlu0 %v286
    %v288 = vpop.xlane.xlu0 %287
    %v289 = vsel %vm270, %v268, -inf
    %290 = vmax.xlane.f32.xlu0 %v289
    %v291 = vpop.xlane.xlu0 %290
    %v292 = vsel %vm270, %v269, -inf
    %293 = vmax.xlane.f32.xlu0 %v292
    %v294 = vpop.xlane.xlu0 %293
    %v295 = vsub.f32 %v262, %v273
    %v296 = vsub.f32 %v263, %v276
    %v297 = vsub.f32 %v264, %v279
    %v298 = vsub.f32 %v265, %v282
    %v299 = vsub.f32 %v266, %v285
    %v300 = vsub.f32 %v267, %v288
    %v301 = vsub.f32 %v268, %v291
    %v302 = vsub.f32 %v269, %v294
    %v303 = vmul.f32 %v295, 1.442695
    %v304 = vpow.pop %v303
    %v305 = vmul.f32 %v296, 1.442695
    %v306 = vpow.pop %v305
    %v307 = vmul.f32 %v297, 1.442695
    %v308 = vpow.pop %v307
    %v309 = vmul.f32 %v298, 1.442695
    %v310 = vpow.pop %v309
    %v311 = vmul.f32 %v299, 1.442695
    %v312 = vpow.pop %v311
    %v313 = vmul.f32 %v300, 1.442695
    %v314 = vpow.pop %v313
    %v315 = vmul.f32 %v301, 1.442695
    %v316 = vpow.pop %v315
    %v317 = vmul.f32 %v302, 1.442695
    %v318 = vpow.pop %v317
    %v319 = vsel %vm270, %v304, 0.0
    %320 = vadd.xlane.f32.xlu0 %v319
    %v321 = vpop.xlane.xlu0 %320
    %v322 = vsel %vm270, %v306, 0.0
    %323 = vadd.xlane.f32.xlu0 %v322
    %v324 = vpop.xlane.xlu0 %323
    %v325 = vsel %vm270, %v308, 0.0
    %326 = vadd.xlane.f32.xlu0 %v325
    %v327 = vpop.xlane.xlu0 %326
    %v328 = vsel %vm270, %v310, 0.0
    %329 = vadd.xlane.f32.xlu0 %v328
    %v330 = vpop.xlane.xlu0 %329
    %v331 = vsel %vm270, %v312, 0.0
    %332 = vadd.xlane.f32.xlu0 %v331
    %v333 = vpop.xlane.xlu0 %332
    %v334 = vsel %vm270, %v314, 0.0
    %335 = vadd.xlane.f32.xlu0 %v334
    %v336 = vpop.xlane.xlu0 %335
    %v337 = vsel %vm270, %v316, 0.0
    %338 = vadd.xlane.f32.xlu0 %v337
    %v339 = vpop.xlane.xlu0 %338
    %v340 = vsel %vm270, %v318, 0.0
    %341 = vadd.xlane.f32.xlu0 %v340
    %v342 = vpop.xlane.xlu0 %341
    %v343 = vrcp.pop %v321
    %v344 = vmul.f32 %v321, %v343
    %v345 = vsub.f32 1.0, %v344
    %v346 = vmul.f32 %v343, %v345
    %v347 = vadd.f32 %v343, %v346
    %vm348 = vweird.f32 %v321
    %vm349 = vweird.f32 %v343
    %vm350 = vmor %vm348, %vm349
    %v351 = vsel %vm350, %v343, %v347
    %v352 = vand.u32 2147483647, %v321
    %vm353 = vcmp.eq.f32.partialorder %v352, 8.507059e+37
    %v354 = vand.u32 %v321, 2147483648
    %v355 = vor.u32 1.1754944e-38, %v354
    %v356 = vsel %vm353, %v355, %v351
    %v357 = vmul.f32 %v304, %v356
    %v358 = vrcp.pop %v324
    %v359 = vmul.f32 %v324, %v358
    %v360 = vsub.f32 1.0, %v359
    %v361 = vmul.f32 %v358, %v360
    %v362 = vadd.f32 %v358, %v361
    %vm363 = vweird.f32 %v324
    %vm364 = vweird.f32 %v358
    %vm365 = vmor %vm363, %vm364
    %v366 = vsel %vm365, %v358, %v362
    %v367 = vand.u32 2147483647, %v324
    %vm368 = vcmp.eq.f32.partialorder %v367, 8.507059e+37
    %v369 = vand.u32 %v324, 2147483648
    %v370 = vor.u32 1.1754944e-38, %v369
    %v371 = vsel %vm368, %v370, %v366
    %v372 = vmul.f32 %v306, %v371
    %v373 = vrcp.pop %v327
    %v374 = vmul.f32 %v327, %v373
    %v375 = vsub.f32 1.0, %v374
    %v376 = vmul.f32 %v373, %v375
    %v377 = vadd.f32 %v373, %v376
    %vm378 = vweird.f32 %v327
    %vm379 = vweird.f32 %v373
    %vm380 = vmor %vm378, %vm379
    %v381 = vsel %vm380, %v373, %v377
    %v382 = vand.u32 2147483647, %v327
    %vm383 = vcmp.eq.f32.partialorder %v382, 8.507059e+37
    %v384 = vand.u32 %v327, 2147483648
    %v385 = vor.u32 1.1754944e-38, %v384
    %v386 = vsel %vm383, %v385, %v381
    %v387 = vmul.f32 %v308, %v386
    %v388 = vrcp.pop %v330
    %v389 = vmul.f32 %v330, %v388
    %v390 = vsub.f32 1.0, %v389
    %v391 = vmul.f32 %v388, %v390
    %v392 = vadd.f32 %v388, %v391
    %vm393 = vweird.f32 %v330
    %vm394 = vweird.f32 %v388
    %vm395 = vmor %vm393, %vm394
    %v396 = vsel %vm395, %v388, %v392
    %v397 = vand.u32 2147483647, %v330
    %vm398 = vcmp.eq.f32.partialorder %v397, 8.507059e+37
    %v399 = vand.u32 %v330, 2147483648
    %v400 = vor.u32 1.1754944e-38, %v399
    %v401 = vsel %vm398, %v400, %v396
    %v402 = vmul.f32 %v310, %v401
    %v403 = vrcp.pop %v333
    %v404 = vmul.f32 %v333, %v403
    %v405 = vsub.f32 1.0, %v404
    %v406 = vmul.f32 %v403, %v405
    %v407 = vadd.f32 %v403, %v406
    %vm408 = vweird.f32 %v333
    %vm409 = vweird.f32 %v403
    %vm410 = vmor %vm408, %vm409
    %v411 = vsel %vm410, %v403, %v407
    %v412 = vand.u32 2147483647, %v333
    %vm413 = vcmp.eq.f32.partialorder %v412, 8.507059e+37
    %v414 = vand.u32 %v333, 2147483648
    %v415 = vor.u32 1.1754944e-38, %v414
    %v416 = vsel %vm413, %v415, %v411
    %v417 = vmul.f32 %v312, %v416
    %v418 = vrcp.pop %v336
    %v419 = vmul.f32 %v336, %v418
    %v420 = vsub.f32 1.0, %v419
    %v421 = vmul.f32 %v418, %v420
    %v422 = vadd.f32 %v418, %v421
    %vm423 = vweird.f32 %v336
    %vm424 = vweird.f32 %v418
    %vm425 = vmor %vm423, %vm424
    %v426 = vsel %vm425, %v418, %v422
    %v427 = vand.u32 2147483647, %v336
    %vm428 = vcmp.eq.f32.partialorder %v427, 8.507059e+37
    %v429 = vand.u32 %v336, 2147483648
    %v430 = vor.u32 1.1754944e-38, %v429
    %v431 = vsel %vm428, %v430, %v426
    %v432 = vmul.f32 %v314, %v431
    %v433 = vrcp.pop %v339
    %v434 = vmul.f32 %v339, %v433
    %v435 = vsub.f32 1.0, %v434
    %v436 = vmul.f32 %v433, %v435
    %v437 = vadd.f32 %v433, %v436
    %vm438 = vweird.f32 %v339
    %vm439 = vweird.f32 %v433
    %vm440 = vmor %vm438, %vm439
    %v441 = vsel %vm440, %v433, %v437
    %v442 = vand.u32 2147483647, %v339
    %vm443 = vcmp.eq.f32.partialorder %v442, 8.507059e+37
    %v444 = vand.u32 %v339, 2147483648
    %v445 = vor.u32 1.1754944e-38, %v444
    %v446 = vsel %vm443, %v445, %v441
    %v447 = vmul.f32 %v316, %v446
    %v448 = vrcp.pop %v342
    %v449 = vmul.f32 %v342, %v448
    %v450 = vsub.f32 1.0, %v449
    %v451 = vmul.f32 %v448, %v450
    %v452 = vadd.f32 %v448, %v451
    %vm453 = vweird.f32 %v342
    %vm454 = vweird.f32 %v448
    %vm455 = vmor %vm453, %vm454
    %v456 = vsel %vm455, %v448, %v452
    %v457 = vand.u32 2147483647, %v342
    %vm458 = vcmp.eq.f32.partialorder %v457, 8.507059e+37
    %v459 = vand.u32 %v342, 2147483648
    %v460 = vor.u32 1.1754944e-38, %v459
    %v461 = vsel %vm458, %v460, %v456
    %v462 = vmul.f32 %v318, %v461
    %463 = vrot.lane.b32.xlu0 %v166, 64
    %v464 = vpop.permute.xlu0 %463
    %465 = vrot.lane.b32.xlu0 %v169, 64
    %v466 = vpop.permute.xlu0 %465
    %v470 = vsel %vm270, %v357, 0
    %v473 = vsel %vm270, %v372, 0
    %v476 = vsel %vm270, %v387, 0
    %v479 = vsel %vm270, %v402, 0
    %v482 = vsel %vm270, %v417, 0
    %v485 = vsel %vm270, %v432, 0
    %v488 = vsel %vm270, %v447, 0
    %v491 = vsel %vm270, %v462, 0
    %493 = vmatpush.msra.mxu0 0.0
    %494 = vmatpush.msra.mxu0 0.0
    %495 = vmatpush.msra.mxu0 0.0
    %496 = vmatpush.msra.mxu0 0.0
    %497 = vmatpush.msra.mxu0 0.0
    %498 = vmatpush.msra.mxu0 0.0
    %499 = vmatpush.msra.mxu0 0.0
    %500 = vmatpush.msra.mxu0 0.0
    %501 = vmatpush.msra.mxu0 0.0
    %502 = vmatpush.msra.mxu0 0.0
    %503 = vmatpush.msra.mxu0 0.0
    %504 = vmatpush.msra.mxu0 0.0
    %505 = vmatpush.msra.mxu0 0.0
    %506 = vmatpush.msra.mxu0 0.0
    %507 = vmatpush.msra.mxu0 %v466
    %508 = vmatpush.msra.mxu0 %v464
    %509 = vmatmul.f32.gmra.mxu0 %v470
    %v510 = vpop.f32.mrf.mxu0
    %v511 = vadd.f32 0.0, %v510
    %512 = vmatmul.f32.gmra.mxu0 %v473
    %v513 = vpop.f32.mrf.mxu0
    %v514 = vadd.f32 0.0, %v513
    %515 = vmatmul.f32.gmra.mxu0 %v476
    %v516 = vpop.f32.mrf.mxu0
    %v517 = vadd.f32 0.0, %v516
    %518 = vmatmul.f32.gmra.mxu0 %v479
    %v519 = vpop.f32.mrf.mxu0
    %v520 = vadd.f32 0.0, %v519
    %521 = vmatmul.f32.gmra.mxu0 %v482
    %v522 = vpop.f32.mrf.mxu0
    %v523 = vadd.f32 0.0, %v522
    %524 = vmatmul.f32.gmra.mxu0 %v485
    %v525 = vpop.f32.mrf.mxu0
    %v526 = vadd.f32 0.0, %v525
    %527 = vmatmul.f32.gmra.mxu0 %v488
    %v528 = vpop.f32.mrf.mxu0
    %v529 = vadd.f32 0.0, %v528
    %530 = vmatmul.f32.gmra.mxu0 %v491
    %v531 = vpop.f32.mrf.mxu0
    %v532 = vadd.f32 0.0, %v531
    %533 = vdwg.mxu0
    %v534 = vmul.f32 %v511, %v100
    %v535 = vmul.f32 %v514, %v101
    %v536 = vmul.f32 %v517, %v102
    %v537 = vmul.f32 %v520, %v103
    %v538 = vmul.f32 %v523, %v104
    %v539 = vmul.f32 %v526, %v105
    %v540 = vmul.f32 %v529, %v106
    %v541 = vmul.f32 %v532, %v107
    %v542 = vadd.f32 %v534, %v536
    %v543 = vadd.f32 %v535, %v537
    %v544 = vadd.f32 %v542, %v538
    %v545 = vadd.f32 %v543, %v539
    %v546 = vadd.f32 %v544, %v540
    %v547 = vadd.f32 %v545, %v541
    %v549 = vsel %vm141, %v546, 0
    %v552 = vsel %vm141, %v547, 0
    %554 = vmatpush.msra.mxu0 0.0
    %555 = vmatpush.msra.mxu0 0.0
    %556 = vmatpush.msra.mxu0 0.0
    %557 = vmatpush.msra.mxu0 0.0
    %558 = vmatpush.msra.mxu0 0.0
    %559 = vmatpush.msra.mxu0 0.0
    %560 = vmatpush.msra.mxu0 0.0
    %561 = vmatpush.msra.mxu0 0.0
    %562 = vmatpush.msra.mxu0 0.0
    %563 = vmatpush.msra.mxu0 0.0
    %564 = vmatpush.msra.mxu0 0.0
    %565 = vmatpush.msra.mxu0 0.0
    %566 = vmatpush.msra.mxu0 %v124
    %567 = vmatpush.msra.mxu0 %v123
    %568 = vmatpush.msra.mxu0 %v122
    %569 = vmatpush.msra.mxu0 %v121
    %570 = vmatmul.f32.gmra.mxu0 %v549
    %v571 = vpop.f32.mrf.mxu0
    %v572 = vadd.f32 0.0, %v571
    %573 = vmatmul.f32.gmra.mxu0 %v552
    %v574 = vpop.f32.mrf.mxu0
    %v575 = vadd.f32 0.0, %v574
    %576 = vdwg.mxu0
    %v577 = vperm.slane %v139, 1
    %v578 = vadd.f32 %v572, %v577
    %v579 = vadd.f32 %v575, %v577
    %v580 = vadd.f32 %v95, %v578
    %v581 = vadd.f32 %v98, %v579
    %v582 = vsel %vm141, %v580, 0.0
    %583 = vadd.xlane.f32.xlu0 %v582
    %v584 = vpop.xlane.xlu0 %583
    %v585 = vsel %vm141, %v581, 0.0
    %586 = vadd.xlane.f32.xlu0 %v585
    %v587 = vpop.xlane.xlu0 %586
    %v588 = vrcp.pop 32.0
    %v589 = vmul.f32 32.0, %v588
    %v590 = vsub.f32 1.0, %v589
    %v591 = vmul.f32 %v588, %v590
    %v592 = vadd.f32 %v588, %v591
    %vm593 = vweird.f32 %v588
    %v594 = vsel %vm593, %v588, %v592
    %v595 = vmul.f32 %v584, %v594
    %v596 = vmul.f32 %v587, %v594
    %v597 = vsub.f32 %v580, %v595
    %v598 = vsub.f32 %v581, %v596
    %v599 = vmul.f32 %v597, %v597
    %v600 = vmul.f32 %v598, %v598
    %v601 = vsel %vm141, %v599, 0.0
    %602 = vadd.xlane.f32.xlu0 %v601
    %v603 = vpop.xlane.xlu0 %602
    %v604 = vsel %vm141, %v600, 0.0
    %605 = vadd.xlane.f32.xlu0 %v604
    %v606 = vpop.xlane.xlu0 %605
    %v607 = vmul.f32 %v603, %v594
    %v608 = vmul.f32 %v606, %v594
    %v609 = vadd.f32 %v607, 1e-05
    %v610 = vadd.f32 %v608, 1e-05
    %v611 = vrsqrt.pop %v609
    %v612 = vmul.f32 %v611, %v609
    %v613 = vmul.f32 %v612, %v611
    %v614 = vmul.f32 0.5, %v613
    %v615 = vsub.f32 1.5, %v614
    %v616 = vmul.f32 %v611, %v615
    %vm617 = vweird.f32 %v609
    %vm618 = vweird.f32 %v611
    %vm619 = vmor %vm617, %vm618
    %v620 = vsel %vm619, %v611, %v616
    %v621 = vrsqrt.pop %v610
    %v622 = vmul.f32 %v621, %v610
    %v623 = vmul.f32 %v622, %v621
    %v624 = vmul.f32 0.5, %v623
    %v625 = vsub.f32 1.5, %v624
    %v626 = vmul.f32 %v621, %v625
    %vm627 = vweird.f32 %v610
    %vm628 = vweird.f32 %v621
    %vm629 = vmor %vm627, %vm628
    %v630 = vsel %vm629, %v621, %v626
    %v631 = vmul.f32 %v597, %v620
    %v632 = vmul.f32 %v598, %v630
    %v633 = vperm.slane %v139, 4
    %v634 = vmul.f32 %v631, %v633
    %v635 = vmul.f32 %v632, %v633
    %v636 = vperm.slane %v139, 5
    %v637 = vadd.f32 %v634, %v636
    %v638 = vadd.f32 %v635, %v636
    %v639 = vperm.slane %v139, 2
    %v641 = vsel %vm141, %v637, 0
    %v644 = vsel %vm141, %v638, 0
    %646 = vmatpush.msra.mxu0 0.0
    %647 = vmatpush.msra.mxu0 0.0
    %648 = vmatpush.msra.mxu0 0.0
    %649 = vmatpush.msra.mxu0 0.0
    %650 = vmatpush.msra.mxu0 0.0
    %651 = vmatpush.msra.mxu0 0.0
    %652 = vmatpush.msra.mxu0 0.0
    %653 = vmatpush.msra.mxu0 0.0
    %654 = vmatpush.msra.mxu0 0.0
    %655 = vmatpush.msra.mxu0 0.0
    %656 = vmatpush.msra.mxu0 0.0
    %657 = vmatpush.msra.mxu0 0.0
    %658 = vmatpush.msra.mxu0 %v129
    %659 = vmatpush.msra.mxu0 %v128
    %660 = vmatpush.msra.mxu0 %v127
    %661 = vmatpush.msra.mxu0 %v126
    %662 = vmatmul.f32.gmra.mxu0 %v641
    %v663 = vpop.f32.mrf.mxu0
    %v664 = vadd.f32 %v639, %v663
    %665 = vmatmul.f32.gmra.mxu0 %v644
    %v666 = vpop.f32.mrf.mxu0
    %v667 = vadd.f32 %v639, %v666
    %668 = vdwg.mxu0
    %v669 = vmax.f32 %v664, 0.0
    %v670 = vmax.f32 %v667, 0.0
    %vm671 = vcmask 523264
    %v673 = vsel %vm671, %v669, 0
    %v676 = vsel %vm671, %v670, 0
    %678 = vmatpush.msra.mxu0 0.0
    %679 = vmatpush.msra.mxu0 0.0
    %680 = vmatpush.msra.mxu0 0.0
    %681 = vmatpush.msra.mxu0 0.0
    %682 = vmatpush.msra.mxu0 0.0
    %683 = vmatpush.msra.mxu0 0.0
    %684 = vmatpush.msra.mxu0 0.0
    %685 = vmatpush.msra.mxu0 0.0
    %686 = vmatpush.msra.mxu0 %v138
    %687 = vmatpush.msra.mxu0 %v137
    %688 = vmatpush.msra.mxu0 %v136
    %689 = vmatpush.msra.mxu0 %v135
    %690 = vmatpush.msra.mxu0 %v134
    %691 = vmatpush.msra.mxu0 %v133
    %692 = vmatpush.msra.mxu0 %v132
    %693 = vmatpush.msra.mxu0 %v131
    %694 = vmatmul.f32.gmra.mxu0 %v673
    %v695 = vpop.f32.mrf.mxu0
    %v696 = vadd.f32 0.0, %v695
    %697 = vmatmul.f32.gmra.mxu0 %v676
    %v698 = vpop.f32.mrf.mxu0
    %v699 = vadd.f32 0.0, %v698
    %700 = vdwg.mxu0
    %v701 = vperm.slane %v139, 3
    %v702 = vadd.f32 %v696, %v701
    %v703 = vadd.f32 %v699, %v701
    %v704 = vadd.f32 %v637, %v702
    %v705 = vadd.f32 %v638, %v703
    %v706 = vsel %vm141, %v704, 0.0
    %707 = vadd.xlane.f32.xlu0 %v706
    %v708 = vpop.xlane.xlu0 %707
    %v709 = vsel %vm141, %v705, 0.0
    %710 = vadd.xlane.f32.xlu0 %v709
    %v711 = vpop.xlane.xlu0 %710
    %v712 = vmul.f32 %v708, %v594
    %v713 = vmul.f32 %v711, %v594
    %v714 = vsub.f32 %v704, %v712
    %v715 = vsub.f32 %v705, %v713
    %v716 = vmul.f32 %v714, %v714
    %v717 = vmul.f32 %v715, %v715
    %v718 = vsel %vm141, %v716, 0.0
    %719 = vadd.xlane.f32.xlu0 %v718
    %v720 = vpop.xlane.xlu0 %719
    %v721 = vsel %vm141, %v717, 0.0
    %722 = vadd.xlane.f32.xlu0 %v721
    %v723 = vpop.xlane.xlu0 %722
    %v724 = vmul.f32 %v720, %v594
    %v725 = vmul.f32 %v723, %v594
    %v726 = vadd.f32 %v724, 1e-05
    %v727 = vadd.f32 %v725, 1e-05
    %v728 = vrsqrt.pop %v726
    %v729 = vmul.f32 %v728, %v726
    %v730 = vmul.f32 %v729, %v728
    %v731 = vmul.f32 0.5, %v730
    %v732 = vsub.f32 1.5, %v731
    %v733 = vmul.f32 %v728, %v732
    %vm734 = vweird.f32 %v726
    %vm735 = vweird.f32 %v728
    %vm736 = vmor %vm734, %vm735
    %v737 = vsel %vm736, %v728, %v733
    %v738 = vrsqrt.pop %v727
    %v739 = vmul.f32 %v738, %v727
    %v740 = vmul.f32 %v739, %v738
    %v741 = vmul.f32 0.5, %v740
    %v742 = vsub.f32 1.5, %v741
    %v743 = vmul.f32 %v738, %v742
    %vm744 = vweird.f32 %v727
    %vm745 = vweird.f32 %v738
    %vm746 = vmor %vm744, %vm745
    %v747 = vsel %vm746, %v738, %v743
    %v748 = vmul.f32 %v714, %v737
    %v749 = vmul.f32 %v715, %v747
    %v750 = vperm.slane %v139, 6
    %v751 = vmul.f32 %v748, %v750
    %v752 = vmul.f32 %v749, %v750
    %v753 = vperm.slane %v139, 7
    %v754 = vadd.f32 %v751, %v753
    %v755 = vadd.f32 %v752, %v753
    %s756 = scalar_lea.vmem [#allocation2], 256
    %v757 = vld [vmem:[%s756] sm:$0xff]
    %v758 = vld [vmem:[%s756 + $0x8] sm:$0xff]
    %v759 = vld [vmem:[%s756 + $0x10] sm:$0xff]
    %v760 = vld [vmem:[%s756 + $0x18] sm:$0xff]
    %s761 = scalar_lea.vmem [#allocation2], 320
    %v762 = vld [vmem:[%s761] sm:$0xff]
    %v763 = vld [vmem:[%s761 + $0x8] sm:$0xff]
    %v764 = vld [vmem:[%s761 + $0x10] sm:$0xff]
    %v765 = vld [vmem:[%s761 + $0x18] sm:$0xff]
    %s766 = scalar_lea.vmem [#allocation2], 384
    %v767 = vld [vmem:[%s766] sm:$0xff]
    %v768 = vld [vmem:[%s766 + $0x8] sm:$0xff]
    %v769 = vld [vmem:[%s766 + $0x10] sm:$0xff]
    %v770 = vld [vmem:[%s766 + $0x18] sm:$0xff]
    %s771 = scalar_lea.vmem [#allocation2], 448
    %v772 = vld [vmem:[%s771] sm:$0xff]
    %v773 = vld [vmem:[%s771 + $0x8] sm:$0xff]
    %v774 = vld [vmem:[%s771 + $0x10] sm:$0xff]
    %v775 = vld [vmem:[%s771 + $0x18] sm:$0xff]
    %v776 = vld [vmem:[%s771 + $0x20] sm:$0xff]
    %v777 = vld [vmem:[%s771 + $0x28] sm:$0xff]
    %v778 = vld [vmem:[%s771 + $0x30] sm:$0xff]
    %v779 = vld [vmem:[%s771 + $0x38] sm:$0xff]
    %s780 = scalar_lea.vmem %s6, 8
    %v781 = vld [vmem:[%s780] sm:$0xff]
    %v782 = vperm.slane %v781, 0
    %v784 = vsel %vm141, %v754, 0
    %v787 = vsel %vm141, %v755, 0
    %789 = vmatpush.msra.mxu0 0.0
    %790 = vmatpush.msra.mxu0 0.0
    %791 = vmatpush.msra.mxu0 0.0
    %792 = vmatpush.msra.mxu0 0.0
    %793 = vmatpush.msra.mxu0 0.0
    %794 = vmatpush.msra.mxu0 0.0
    %795 = vmatpush.msra.mxu0 0.0
    %796 = vmatpush.msra.mxu0 0.0
    %797 = vmatpush.msra.mxu0 0.0
    %798 = vmatpush.msra.mxu0 0.0
    %799 = vmatpush.msra.mxu0 0.0
    %800 = vmatpush.msra.mxu0 0.0
    %801 = vmatpush.msra.mxu0 %v760
    %802 = vmatpush.msra.mxu0 %v759
    %803 = vmatpush.msra.mxu0 %v758
    %804 = vmatpush.msra.mxu0 %v757
    %805 = vmatmul.f32.gmra.mxu0 %v784
    %v806 = vpop.f32.mrf.mxu0
    %v807 = vadd.f32 %v782, %v806
    %808 = vmatmul.f32.gmra.mxu0 %v787
    %v809 = vpop.f32.mrf.mxu0
    %v810 = vadd.f32 %v782, %v809
    %811 = vdwg.mxu0
    %v812 = vmul.f32 %v807, %v100
    %v813 = vmul.f32 %v810, %v101
    %v814 = vmul.f32 %v807, %v102
    %v815 = vmul.f32 %v810, %v103
    %v816 = vmul.f32 %v807, %v104
    %v817 = vmul.f32 %v810, %v105
    %v818 = vmul.f32 %v807, %v106
    %v819 = vmul.f32 %v810, %v107
    %822 = vrot.lane.b32.xlu0 %v807, 96
    %v823 = vpop.permute.xlu0 %822
    %824 = vrot.lane.b32.xlu0 %v810, 96
    %v825 = vpop.permute.xlu0 %824
    %v827 = vsel %vm141, %v812, 0
    %v830 = vsel %vm141, %v813, 0
    %v833 = vsel %vm141, %v814, 0
    %v836 = vsel %vm141, %v815, 0
    %v839 = vsel %vm141, %v816, 0
    %v842 = vsel %vm141, %v817, 0
    %v845 = vsel %vm141, %v818, 0
    %v848 = vsel %vm141, %v819, 0
    %v850 = vsel %vm141, %v823, 0
    %v852 = vsel %vm141, %v825, 0
    %854 = vmatpush.xpose.msra.mxu0 0.0
    %855 = vmatpush.xpose.msra.mxu0 0.0
    %856 = vmatpush.xpose.msra.mxu0 0.0
    %857 = vmatpush.xpose.msra.mxu0 0.0
    %858 = vmatpush.xpose.msra.mxu0 0.0
    %859 = vmatpush.xpose.msra.mxu0 0.0
    %860 = vmatpush.xpose.msra.mxu0 0.0
    %861 = vmatpush.xpose.msra.mxu0 0.0
    %862 = vmatpush.xpose.msra.mxu0 0.0
    %863 = vmatpush.xpose.msra.mxu0 0.0
    %864 = vmatpush.xpose.msra.mxu0 0.0
    %865 = vmatpush.xpose.msra.mxu0 0.0
    %866 = vmatpush.xpose.msra.mxu0 0.0
    %867 = vmatpush.xpose.msra.mxu0 0.0
    %868 = vmatpush.xpose.msra.mxu0 %v852
    %869 = vmatpush.xpose.msra.mxu0 %v850
    %870 = vmatmul.f32.gmra.mxu0 %v827
    %v871 = vpop.f32.mrf.mxu0
    %v872 = vadd.f32 0.0, %v871
    %873 = vmatmul.f32.gmra.mxu0 %v830
    %v874 = vpop.f32.mrf.mxu0
    %v875 = vadd.f32 0.0, %v874
    %876 = vmatmul.f32.gmra.mxu0 %v833
    %v877 = vpop.f32.mrf.mxu0
    %v878 = vadd.f32 0.0, %v877
    %879 = vmatmul.f32.gmra.mxu0 %v836
    %v880 = vpop.f32.mrf.mxu0
    %v881 = vadd.f32 0.0, %v880
    %882 = vmatmul.f32.gmra.mxu0 %v839
    %v883 = vpop.f32.mrf.mxu0
    %v884 = vadd.f32 0.0, %v883
    %885 = vmatmul.f32.gmra.mxu0 %v842
    %v886 = vpop.f32.mrf.mxu0
    %v887 = vadd.f32 0.0, %v886
    %888 = vmatmul.f32.gmra.mxu0 %v845
    %v889 = vpop.f32.mrf.mxu0
    %v890 = vadd.f32 0.0, %v889
    %891 = vmatmul.f32.gmra.mxu0 %v848
    %v892 = vpop.f32.mrf.mxu0
    %v893 = vadd.f32 0.0, %v892
    %894 = vdwg.mxu0
    %v895 = vmul.f32 %v872, 0.35355338
    %v896 = vmul.f32 %v875, 0.35355338
    %v897 = vmul.f32 %v878, 0.35355338
    %v898 = vmul.f32 %v881, 0.35355338
    %v899 = vmul.f32 %v884, 0.35355338
    %v900 = vmul.f32 %v887, 0.35355338
    %v901 = vmul.f32 %v890, 0.35355338
    %v902 = vmul.f32 %v893, 0.35355338
    %v903 = vadd.f32 %v895, %v108
    %v904 = vadd.f32 %v896, %v109
    %v905 = vadd.f32 %v897, %v110
    %v906 = vadd.f32 %v898, %v111
    %v907 = vadd.f32 %v899, %v112
    %v908 = vadd.f32 %v900, %v113
    %v909 = vadd.f32 %v901, %v114
    %v910 = vadd.f32 %v902, %v115
    %v911 = vsel %vm270, %v903, -inf
    %912 = vmax.xlane.f32.xlu0 %v911
    %v913 = vpop.xlane.xlu0 %912
    %v914 = vsel %vm270, %v904, -inf
    %915 = vmax.xlane.f32.xlu0 %v914
    %v916 = vpop.xlane.xlu0 %915
    %v917 = vsel %vm270, %v905, -inf
    %918 = vmax.xlane.f32.xlu0 %v917
    %v919 = vpop.xlane.xlu0 %918
    %v920 = vsel %vm270, %v906, -inf
    %921 = vmax.xlane.f32.xlu0 %v920
    %v922 = vpop.xlane.xlu0 %921
    %v923 = vsel %vm270, %v907, -inf
    %924 = vmax.xlane.f32.xlu0 %v923
    %v925 = vpop.xlane.xlu0 %924
    %v926 = vsel %vm270, %v908, -inf
    %927 = vmax.xlane.f32.xlu0 %v926
    %v928 = vpop.xlane.xlu0 %927
    %v929 = vsel %vm270, %v909, -inf
    %930 = vmax.xlane.f32.xlu0 %v929
    %v931 = vpop.xlane.xlu0 %930
    %v932 = vsel %vm270, %v910, -inf
    %933 = vmax.xlane.f32.xlu0 %v932
    %v934 = vpop.xlane.xlu0 %933
    %v935 = vsub.f32 %v903, %v913
    %v936 = vsub.f32 %v904, %v916
    %v937 = vsub.f32 %v905, %v919
    %v938 = vsub.f32 %v906, %v922
    %v939 = vsub.f32 %v907, %v925
    %v940 = vsub.f32 %v908, %v928
    %v941 = vsub.f32 %v909, %v931
    %v942 = vsub.f32 %v910, %v934
    %v943 = vmul.f32 %v935, 1.442695
    %v944 = vpow.pop %v943
    %v945 = vmul.f32 %v936, 1.442695
    %v946 = vpow.pop %v945
    %v947 = vmul.f32 %v937, 1.442695
    %v948 = vpow.pop %v947
    %v949 = vmul.f32 %v938, 1.442695
    %v950 = vpow.pop %v949
    %v951 = vmul.f32 %v939, 1.442695
    %v952 = vpow.pop %v951
    %v953 = vmul.f32 %v940, 1.442695
    %v954 = vpow.pop %v953
    %v955 = vmul.f32 %v941, 1.442695
    %v956 = vpow.pop %v955
    %v957 = vmul.f32 %v942, 1.442695
    %v958 = vpow.pop %v957
    %v959 = vsel %vm270, %v944, 0.0
    %960 = vadd.xlane.f32.xlu0 %v959
    %v961 = vpop.xlane.xlu0 %960
    %v962 = vsel %vm270, %v946, 0.0
    %963 = vadd.xlane.f32.xlu0 %v962
    %v964 = vpop.xlane.xlu0 %963
    %v965 = vsel %vm270, %v948, 0.0
    %966 = vadd.xlane.f32.xlu0 %v965
    %v967 = vpop.xlane.xlu0 %966
    %v968 = vsel %vm270, %v950, 0.0
    %969 = vadd.xlane.f32.xlu0 %v968
    %v970 = vpop.xlane.xlu0 %969
    %v971 = vsel %vm270, %v952, 0.0
    %972 = vadd.xlane.f32.xlu0 %v971
    %v973 = vpop.xlane.xlu0 %972
    %v974 = vsel %vm270, %v954, 0.0
    %975 = vadd.xlane.f32.xlu0 %v974
    %v976 = vpop.xlane.xlu0 %975
    %v977 = vsel %vm270, %v956, 0.0
    %978 = vadd.xlane.f32.xlu0 %v977
    %v979 = vpop.xlane.xlu0 %978
    %v980 = vsel %vm270, %v958, 0.0
    %981 = vadd.xlane.f32.xlu0 %v980
    %v982 = vpop.xlane.xlu0 %981
    %v983 = vrcp.pop %v961
    %v984 = vmul.f32 %v961, %v983
    %v985 = vsub.f32 1.0, %v984
    %v986 = vmul.f32 %v983, %v985
    %v987 = vadd.f32 %v983, %v986
    %vm988 = vweird.f32 %v961
    %vm989 = vweird.f32 %v983
    %vm990 = vmor %vm988, %vm989
    %v991 = vsel %vm990, %v983, %v987
    %v992 = vand.u32 2147483647, %v961
    %vm993 = vcmp.eq.f32.partialorder %v992, 8.507059e+37
    %v994 = vand.u32 %v961, 2147483648
    %v995 = vor.u32 1.1754944e-38, %v994
    %v996 = vsel %vm993, %v995, %v991
    %v997 = vmul.f32 %v944, %v996
    %v998 = vrcp.pop %v964
    %v999 = vmul.f32 %v964, %v998
    %v1000 = vsub.f32 1.0, %v999
    %v1001 = vmul.f32 %v998, %v1000
    %v1002 = vadd.f32 %v998, %v1001
    %vm1003 = vweird.f32 %v964
    %vm1004 = vweird.f32 %v998
    %vm1005 = vmor %vm1003, %vm1004
    %v1006 = vsel %vm1005, %v998, %v1002
    %v1007 = vand.u32 2147483647, %v964
    %vm1008 = vcmp.eq.f32.partialorder %v1007, 8.507059e+37
    %v1009 = vand.u32 %v964, 2147483648
    %v1010 = vor.u32 1.1754944e-38, %v1009
    %v1011 = vsel %vm1008, %v1010, %v1006
    %v1012 = vmul.f32 %v946, %v1011
    %v1013 = vrcp.pop %v967
    %v1014 = vmul.f32 %v967, %v1013
    %v1015 = vsub.f32 1.0, %v1014
    %v1016 = vmul.f32 %v1013, %v1015
    %v1017 = vadd.f32 %v1013, %v1016
    %vm1018 = vweird.f32 %v967
    %vm1019 = vweird.f32 %v1013
    %vm1020 = vmor %vm1018, %vm1019
    %v1021 = vsel %vm1020, %v1013, %v1017
    %v1022 = vand.u32 2147483647, %v967
    %vm1023 = vcmp.eq.f32.partialorder %v1022, 8.507059e+37
    %v1024 = vand.u32 %v967, 2147483648
    %v1025 = vor.u32 1.1754944e-38, %v1024
    %v1026 = vsel %vm1023, %v1025, %v1021
    %v1027 = vmul.f32 %v948, %v1026
    %v1028 = vrcp.pop %v970
    %v1029 = vmul.f32 %v970, %v1028
    %v1030 = vsub.f32 1.0, %v1029
    %v1031 = vmul.f32 %v1028, %v1030
    %v1032 = vadd.f32 %v1028, %v1031
    %vm1033 = vweird.f32 %v970
    %vm1034 = vweird.f32 %v1028
    %vm1035 = vmor %vm1033, %vm1034
    %v1036 = vsel %vm1035, %v1028, %v1032
    %v1037 = vand.u32 2147483647, %v970
    %vm1038 = vcmp.eq.f32.partialorder %v1037, 8.507059e+37
    %v1039 = vand.u32 %v970, 2147483648
    %v1040 = vor.u32 1.1754944e-38, %v1039
    %v1041 = vsel %vm1038, %v1040, %v1036
    %v1042 = vmul.f32 %v950, %v1041
    %v1043 = vrcp.pop %v973
    %v1044 = vmul.f32 %v973, %v1043
    %v1045 = vsub.f32 1.0, %v1044
    %v1046 = vmul.f32 %v1043, %v1045
    %v1047 = vadd.f32 %v1043, %v1046
    %vm1048 = vweird.f32 %v973
    %vm1049 = vweird.f32 %v1043
    %vm1050 = vmor %vm1048, %vm1049
    %v1051 = vsel %vm1050, %v1043, %v1047
    %v1052 = vand.u32 2147483647, %v973
    %vm1053 = vcmp.eq.f32.partialorder %v1052, 8.507059e+37
    %v1054 = vand.u32 %v973, 2147483648
    %v1055 = vor.u32 1.1754944e-38, %v1054
    %v1056 = vsel %vm1053, %v1055, %v1051
    %v1057 = vmul.f32 %v952, %v1056
    %v1058 = vrcp.pop %v976
    %v1059 = vmul.f32 %v976, %v1058
    %v1060 = vsub.f32 1.0, %v1059
    %v1061 = vmul.f32 %v1058, %v1060
    %v1062 = vadd.f32 %v1058, %v1061
    %vm1063 = vweird.f32 %v976
    %vm1064 = vweird.f32 %v1058
    %vm1065 = vmor %vm1063, %vm1064
    %v1066 = vsel %vm1065, %v1058, %v1062
    %v1067 = vand.u32 2147483647, %v976
    %vm1068 = vcmp.eq.f32.partialorder %v1067, 8.507059e+37
    %v1069 = vand.u32 %v976, 2147483648
    %v1070 = vor.u32 1.1754944e-38, %v1069
    %v1071 = vsel %vm1068, %v1070, %v1066
    %v1072 = vmul.f32 %v954, %v1071
    %v1073 = vrcp.pop %v979
    %v1074 = vmul.f32 %v979, %v1073
    %v1075 = vsub.f32 1.0, %v1074
    %v1076 = vmul.f32 %v1073, %v1075
    %v1077 = vadd.f32 %v1073, %v1076
    %vm1078 = vweird.f32 %v979
    %vm1079 = vweird.f32 %v1073
    %vm1080 = vmor %vm1078, %vm1079
    %v1081 = vsel %vm1080, %v1073, %v1077
    %v1082 = vand.u32 2147483647, %v979
    %vm1083 = vcmp.eq.f32.partialorder %v1082, 8.507059e+37
    %v1084 = vand.u32 %v979, 2147483648
    %v1085 = vor.u32 1.1754944e-38, %v1084
    %v1086 = vsel %vm1083, %v1085, %v1081
    %v1087 = vmul.f32 %v956, %v1086
    %v1088 = vrcp.pop %v982
    %v1089 = vmul.f32 %v982, %v1088
    %v1090 = vsub.f32 1.0, %v1089
    %v1091 = vmul.f32 %v1088, %v1090
    %v1092 = vadd.f32 %v1088, %v1091
    %vm1093 = vweird.f32 %v982
    %vm1094 = vweird.f32 %v1088
    %vm1095 = vmor %vm1093, %vm1094
    %v1096 = vsel %vm1095, %v1088, %v1092
    %v1097 = vand.u32 2147483647, %v982
    %vm1098 = vcmp.eq.f32.partialorder %v1097, 8.507059e+37
    %v1099 = vand.u32 %v982, 2147483648
    %v1100 = vor.u32 1.1754944e-38, %v1099
    %v1101 = vsel %vm1098, %v1100, %v1096
    %v1102 = vmul.f32 %v958, %v1101
    %1103 = vrot.lane.b32.xlu0 %v807, 64
    %v1104 = vpop.permute.xlu0 %1103
    %1105 = vrot.lane.b32.xlu0 %v810, 64
    %v1106 = vpop.permute.xlu0 %1105
    %v1110 = vsel %vm270, %v997, 0
    %v1113 = vsel %vm270, %v1012, 0
    %v1116 = vsel %vm270, %v1027, 0
    %v1119 = vsel %vm270, %v1042, 0
    %v1122 = vsel %vm270, %v1057, 0
    %v1125 = vsel %vm270, %v1072, 0
    %v1128 = vsel %vm270, %v1087, 0
    %v1131 = vsel %vm270, %v1102, 0
    %1133 = vmatpush.msra.mxu0 0.0
    %1134 = vmatpush.msra.mxu0 0.0
    %1135 = vmatpush.msra.mxu0 0.0
    %1136 = vmatpush.msra.mxu0 0.0
    %1137 = vmatpush.msra.mxu0 0.0
    %1138 = vmatpush.msra.mxu0 0.0
    %1139 = vmatpush.msra.mxu0 0.0
    %1140 = vmatpush.msra.mxu0 0.0
    %1141 = vmatpush.msra.mxu0 0.0
    %1142 = vmatpush.msra.mxu0 0.0
    %1143 = vmatpush.msra.mxu0 0.0
    %1144 = vmatpush.msra.mxu0 0.0
    %1145 = vmatpush.msra.mxu0 0.0
    %1146 = vmatpush.msra.mxu0 0.0
    %1147 = vmatpush.msra.mxu0 %v1106
    %1148 = vmatpush.msra.mxu0 %v1104
    %1149 = vmatmul.f32.gmra.mxu0 %v1110
    %v1150 = vpop.f32.mrf.mxu0
    %v1151 = vadd.f32 0.0, %v1150
    %1152 = vmatmul.f32.gmra.mxu0 %v1113
    %v1153 = vpop.f32.mrf.mxu0
    %v1154 = vadd.f32 0.0, %v1153
    %1155 = vmatmul.f32.gmra.mxu0 %v1116
    %v1156 = vpop.f32.mrf.mxu0
    %v1157 = vadd.f32 0.0, %v1156
    %1158 = vmatmul.f32.gmra.mxu0 %v1119
    %v1159 = vpop.f32.mrf.mxu0
    %v1160 = vadd.f32 0.0, %v1159
    %1161 = vmatmul.f32.gmra.mxu0 %v1122
    %v1162 = vpop.f32.mrf.mxu0
    %v1163 = vadd.f32 0.0, %v1162
    %1164 = vmatmul.f32.gmra.mxu0 %v1125
    %v1165 = vpop.f32.mrf.mxu0
    %v1166 = vadd.f32 0.0, %v1165
    %1167 = vmatmul.f32.gmra.mxu0 %v1128
    %v1168 = vpop.f32.mrf.mxu0
    %v1169 = vadd.f32 0.0, %v1168
    %1170 = vmatmul.f32.gmra.mxu0 %v1131
    %v1171 = vpop.f32.mrf.mxu0
    %v1172 = vadd.f32 0.0, %v1171
    %1173 = vdwg.mxu0
    %v1174 = vmul.f32 %v1151, %v100
    %v1175 = vmul.f32 %v1154, %v101
    %v1176 = vmul.f32 %v1157, %v102
    %v1177 = vmul.f32 %v1160, %v103
    %v1178 = vmul.f32 %v1163, %v104
    %v1179 = vmul.f32 %v1166, %v105
    %v1180 = vmul.f32 %v1169, %v106
    %v1181 = vmul.f32 %v1172, %v107
    %v1182 = vadd.f32 %v1174, %v1176
    %v1183 = vadd.f32 %v1175, %v1177
    %v1184 = vadd.f32 %v1182, %v1178
    %v1185 = vadd.f32 %v1183, %v1179
    %v1186 = vadd.f32 %v1184, %v1180
    %v1187 = vadd.f32 %v1185, %v1181
    %v1189 = vsel %vm141, %v1186, 0
    %v1192 = vsel %vm141, %v1187, 0
    %1194 = vmatpush.msra.mxu0 0.0
    %1195 = vmatpush.msra.mxu0 0.0
    %1196 = vmatpush.msra.mxu0 0.0
    %1197 = vmatpush.msra.mxu0 0.0
    %1198 = vmatpush.msra.mxu0 0.0
    %1199 = vmatpush.msra.mxu0 0.0
    %1200 = vmatpush.msra.mxu0 0.0
    %1201 = vmatpush.msra.mxu0 0.0
    %1202 = vmatpush.msra.mxu0 0.0
    %1203 = vmatpush.msra.mxu0 0.0
    %1204 = vmatpush.msra.mxu0 0.0
    %1205 = vmatpush.msra.mxu0 0.0
    %1206 = vmatpush.msra.mxu0 %v765
    %1207 = vmatpush.msra.mxu0 %v764
    %1208 = vmatpush.msra.mxu0 %v763
    %1209 = vmatpush.msra.mxu0 %v762
    %1210 = vmatmul.f32.gmra.mxu0 %v1189
    %v1211 = vpop.f32.mrf.mxu0
    %v1212 = vadd.f32 0.0, %v1211
    %1213 = vmatmul.f32.gmra.mxu0 %v1192
    %v1214 = vpop.f32.mrf.mxu0
    %v1215 = vadd.f32 0.0, %v1214
    %1216 = vdwg.mxu0
    %v1217 = vperm.slane %v781, 1
    %v1218 = vadd.f32 %v1212, %v1217
    %v1219 = vadd.f32 %v1215, %v1217
    %v1220 = vadd.f32 %v754, %v1218
    %v1221 = vadd.f32 %v755, %v1219
    %v1222 = vsel %vm141, %v1220, 0.0
    %1223 = vadd.xlane.f32.xlu0 %v1222
    %v1224 = vpop.xlane.xlu0 %1223
    %v1225 = vsel %vm141, %v1221, 0.0
    %1226 = vadd.xlane.f32.xlu0 %v1225
    %v1227 = vpop.xlane.xlu0 %1226
    %v1228 = vmul.f32 %v1224, %v594
    %v1229 = vmul.f32 %v1227, %v594
    %v1230 = vsub.f32 %v1220, %v1228
    %v1231 = vsub.f32 %v1221, %v1229
    %v1232 = vmul.f32 %v1230, %v1230
    %v1233 = vmul.f32 %v1231, %v1231
    %v1234 = vsel %vm141, %v1232, 0.0
    %1235 = vadd.xlane.f32.xlu0 %v1234
    %v1236 = vpop.xlane.xlu0 %1235
    %v1237 = vsel %vm141, %v1233, 0.0
    %1238 = vadd.xlane.f32.xlu0 %v1237
    %v1239 = vpop.xlane.xlu0 %1238
    %v1240 = vmul.f32 %v1236, %v594
    %v1241 = vmul.f32 %v1239, %v594
    %v1242 = vadd.f32 %v1240, 1e-05
    %v1243 = vadd.f32 %v1241, 1e-05
    %v1244 = vrsqrt.pop %v1242
    %v1245 = vmul.f32 %v1244, %v1242
    %v1246 = vmul.f32 %v1245, %v1244
    %v1247 = vmul.f32 0.5, %v1246
    %v1248 = vsub.f32 1.5, %v1247
    %v1249 = vmul.f32 %v1244, %v1248
    %vm1250 = vweird.f32 %v1242
    %vm1251 = vweird.f32 %v1244
    %vm1252 = vmor %vm1250, %vm1251
    %v1253 = vsel %vm1252, %v1244, %v1249
    %v1254 = vrsqrt.pop %v1243
    %v1255 = vmul.f32 %v1254, %v1243
    %v1256 = vmul.f32 %v1255, %v1254
    %v1257 = vmul.f32 0.5, %v1256
    %v1258 = vsub.f32 1.5, %v1257
    %v1259 = vmul.f32 %v1254, %v1258
    %vm1260 = vweird.f32 %v1243
    %vm1261 = vweird.f32 %v1254
    %vm1262 = vmor %vm1260, %vm1261
    %v1263 = vsel %vm1262, %v1254, %v1259
    %v1264 = vmul.f32 %v1230, %v1253
    %v1265 = vmul.f32 %v1231, %v1263
    %v1266 = vperm.slane %v781, 4
    %v1267 = vmul.f32 %v1264, %v1266
    %v1268 = vmul.f32 %v1265, %v1266
    %v1269 = vperm.slane %v781, 5
    %v1270 = vadd.f32 %v1267, %v1269
    %v1271 = vadd.f32 %v1268, %v1269
    %v1272 = vperm.slane %v781, 2
    %v1274 = vsel %vm141, %v1270, 0
    %v1277 = vsel %vm141, %v1271, 0
    %1279 = vmatpush.msra.mxu0 0.0
    %1280 = vmatpush.msra.mxu0 0.0
    %1281 = vmatpush.msra.mxu0 0.0
    %1282 = vmatpush.msra.mxu0 0.0
    %1283 = vmatpush.msra.mxu0 0.0
    %1284 = vmatpush.msra.mxu0 0.0
    %1285 = vmatpush.msra.mxu0 0.0
    %1286 = vmatpush.msra.mxu0 0.0
    %1287 = vmatpush.msra.mxu0 0.0
    %1288 = vmatpush.msra.mxu0 0.0
    %1289 = vmatpush.msra.mxu0 0.0
    %1290 = vmatpush.msra.mxu0 0.0
    %1291 = vmatpush.msra.mxu0 %v770
    %1292 = vmatpush.msra.mxu0 %v769
    %1293 = vmatpush.msra.mxu0 %v768
    %1294 = vmatpush.msra.mxu0 %v767
    %1295 = vmatmul.f32.gmra.mxu0 %v1274
    %v1296 = vpop.f32.mrf.mxu0
    %v1297 = vadd.f32 %v1272, %v1296
    %1298 = vmatmul.f32.gmra.mxu0 %v1277
    %v1299 = vpop.f32.mrf.mxu0
    %v1300 = vadd.f32 %v1272, %v1299
    %1301 = vdwg.mxu0
    %v1302 = vmax.f32 %v1297, 0.0
    %v1303 = vmax.f32 %v1300, 0.0
    %v1305 = vsel %vm671, %v1302, 0
    %v1308 = vsel %vm671, %v1303, 0
    %1310 = vmatpush.msra.mxu0 0.0
    %1311 = vmatpush.msra.mxu0 0.0
    %1312 = vmatpush.msra.mxu0 0.0
    %1313 = vmatpush.msra.mxu0 0.0
    %1314 = vmatpush.msra.mxu0 0.0
    %1315 = vmatpush.msra.mxu0 0.0
    %1316 = vmatpush.msra.mxu0 0.0
    %1317 = vmatpush.msra.mxu0 0.0
    %1318 = vmatpush.msra.mxu0 %v779
    %1319 = vmatpush.msra.mxu0 %v778
    %1320 = vmatpush.msra.mxu0 %v777
    %1321 = vmatpush.msra.mxu0 %v776
    %1322 = vmatpush.msra.mxu0 %v775
    %1323 = vmatpush.msra.mxu0 %v774
    %1324 = vmatpush.msra.mxu0 %v773
    %1325 = vmatpush.msra.mxu0 %v772
    %1326 = vmatmul.f32.gmra.mxu0 %v1305
    %v1327 = vpop.f32.mrf.mxu0
    %v1328 = vadd.f32 0.0, %v1327
    %1329 = vmatmul.f32.gmra.mxu0 %v1308
    %v1330 = vpop.f32.mrf.mxu0
    %v1331 = vadd.f32 0.0, %v1330
    %1332 = vdwg.mxu0
    %v1333 = vperm.slane %v781, 3
    %v1334 = vadd.f32 %v1328, %v1333
    %v1335 = vadd.f32 %v1331, %v1333
    %v1336 = vadd.f32 %v1270, %v1334
    %v1337 = vadd.f32 %v1271, %v1335
    %v1338 = vsel %vm141, %v1336, 0.0
    %1339 = vadd.xlane.f32.xlu0 %v1338
    %v1340 = vpop.xlane.xlu0 %1339
    %v1341 = vsel %vm141, %v1337, 0.0
    %1342 = vadd.xlane.f32.xlu0 %v1341
    %v1343 = vpop.xlane.xlu0 %1342
    %v1344 = vmul.f32 %v1340, %v594
    %v1345 = vmul.f32 %v1343, %v594
    %v1346 = vsub.f32 %v1336, %v1344
    %v1347 = vsub.f32 %v1337, %v1345
    %v1348 = vmul.f32 %v1346, %v1346
    %v1349 = vmul.f32 %v1347, %v1347
    %v1350 = vsel %vm141, %v1348, 0.0
    %1351 = vadd.xlane.f32.xlu0 %v1350
    %v1352 = vpop.xlane.xlu0 %1351
    %v1353 = vsel %vm141, %v1349, 0.0
    %1354 = vadd.xlane.f32.xlu0 %v1353
    %v1355 = vpop.xlane.xlu0 %1354
    %v1356 = vmul.f32 %v1352, %v594
    %v1357 = vmul.f32 %v1355, %v594
    %v1358 = vadd.f32 %v1356, 1e-05
    %v1359 = vadd.f32 %v1357, 1e-05
    %v1360 = vrsqrt.pop %v1358
    %v1361 = vmul.f32 %v1360, %v1358
    %v1362 = vmul.f32 %v1361, %v1360
    %v1363 = vmul.f32 0.5, %v1362
    %v1364 = vsub.f32 1.5, %v1363
    %v1365 = vmul.f32 %v1360, %v1364
    %vm1366 = vweird.f32 %v1358
    %vm1367 = vweird.f32 %v1360
    %vm1368 = vmor %vm1366, %vm1367
    %v1369 = vsel %vm1368, %v1360, %v1365
    %v1370 = vrsqrt.pop %v1359
    %v1371 = vmul.f32 %v1370, %v1359
    %v1372 = vmul.f32 %v1371, %v1370
    %v1373 = vmul.f32 0.5, %v1372
    %v1374 = vsub.f32 1.5, %v1373
    %v1375 = vmul.f32 %v1370, %v1374
    %vm1376 = vweird.f32 %v1359
    %vm1377 = vweird.f32 %v1370
    %vm1378 = vmor %vm1376, %vm1377
    %v1379 = vsel %vm1378, %v1370, %v1375
    %v1380 = vmul.f32 %v1346, %v1369
    %v1381 = vmul.f32 %v1347, %v1379
    %v1382 = vperm.slane %v781, 6
    %v1383 = vmul.f32 %v1380, %v1382
    %v1384 = vmul.f32 %v1381, %v1382
    %v1385 = vperm.slane %v781, 7
    %v1386 = vadd.f32 %v1383, %v1385
    %v1387 = vadd.f32 %v1384, %v1385
    %v1388 = vsel %vm141, %v1386, 0.0
    %v1389 = vsel %vm141, %v1387, 0.0
    %1390 = vst [vmem:[#allocation5] sm:$0xff] %v1388
    %1391 = vst [vmem:[#allocation5 + $0x8] sm:$0xff] %v1389
    // Predicated region
    $region34: #{tpu_custom_call.1} parent=1 // pred_check
      _
    $region35: #{tpu_custom_call.1} parent=1 // pred_check_branch
      %1393 = sbr.rel (0) target = $region37
    $region36: #{tpu_custom_call.1} parent=1 // pred_region
      %1395 = vsyncadd [#allocation4], 0
      %s1396 = sshll.u32 [#allocation5], 4
      %s1397 = int_to_ptr.vmem [resolvable:$true] %s1396
      %s1398 = sshll.u32 %s7, 4
      %s1399 = int_to_ptr.hbm [resolvable:$true] %s1398
      %1404 = dma.vmem_to_hbm [thread:$0]  %s1397, 256, %s1399, [#allocation4], 128, 128, 8
    $region37: #{tpu_custom_call.1} parent=1 // pred_fallthru
      _
    // Predicated region
    $region38: #{tpu_custom_call.1} parent=1 // pred_check
      _
    $region39: #{tpu_custom_call.1} parent=1 // pred_check_branch
      %1406 = sbr.rel (0) target = $region41
    $region40: #{tpu_custom_call.1} parent=1 // pred_region
      %1408 = dma.done [#allocation4], 256
    $region41: #{tpu_custom_call.1} parent=1 // pred_fallthru
      _
    %1409 = vsyncpa [#allocation3], 1
    %1410 = vsyncpa [#allocation4], 1

</llo_original>
